<compile_context>
chip_gen: v6e
topology: v6e:2x2x1
jax: 0.10.0
libtpu: 0.0.40
codegen_flags: <defaults>
</compile_context>

<pallas_src>
import functools

import jax
import jax.numpy as jnp
from jax.experimental import pallas as pl
from jax.experimental.pallas import tpu as pltpu

DIMS = [784, 512, 256, 128, 64, 10]
PAD_IN = 896    # 784 padded up to a multiple of 128 (zero columns/rows)
PAD_OUT = 128   # layer-4 (64) and final (10) widths padded to one lane tile


def _round_up(x, m):
    return (x + m - 1) // m * m


def mlp_kernel(x_ref,
               w1_ref, b1_ref,
               w2_ref, b2_ref,
               w3_ref, b3_ref,
               w4_ref, b4_ref,
               w5_ref, b5_ref,
               o_ref):
    # Hidden layers: bf16 matmul on the MXU with f32 accumulation,
    # bias add + ReLU on the VPU, recast to bf16 for the next matmul.
    h = x_ref[...]                                           # (TB, 896) bf16
    for w_ref, b_ref in ((w1_ref, b1_ref), (w2_ref, b2_ref),
                         (w3_ref, b3_ref), (w4_ref, b4_ref)):
        acc = jnp.dot(h, w_ref[...],
                      preferred_element_type=jnp.float32) + b_ref[...]
        h = jnp.maximum(acc, 0.0).astype(jnp.bfloat16)
    # Final layer: logits (no activation); lane-dense 128-wide unmasked store.
    o_ref[...] = (
        jnp.dot(h, w5_ref[...], preferred_element_type=jnp.float32)
        + b5_ref[...]
    ).astype(o_ref.dtype)


def prepare_params(params):
    """One-time lane-alignment of parameters (all padding is exact zeros,
    so the math is identical).  Call once; reuse the result for every forward."""
    (w1, b1), (w2, b2), (w3, b3), (w4, b4), (w5, b5) = params
    w1p = jnp.pad(w1, ((0, PAD_IN - DIMS[0]), (0, 0)))                   # (896, 512)
    w4p = jnp.pad(w4, ((0, 0), (0, PAD_OUT - DIMS[4])))                  # (128, 128)
    b4p = jnp.pad(b4, ((0, 0), (0, PAD_OUT - DIMS[4])))                  # (1, 128)
    w5p = jnp.pad(w5, ((0, PAD_OUT - DIMS[4]), (0, PAD_OUT - DIMS[5])))  # (128, 128)
    b5p = jnp.pad(b5, ((0, 0), (0, PAD_OUT - DIMS[5])))                  # (1, 128)
    return (w1p, b1, w2, b2, w3, b3, w4p, b4p, w5p, b5p)


@functools.partial(jax.jit, static_argnames=("batch_tile",))
def net_forward(x_nchw, flat_params, *, batch_tile=512):
    """Forward pass of `Net`. x_nchw: (B, 1, 28, 28) -> (B, 10) float32.

    flat_params: output of prepare_params().
    batch_tile: rows per grid step (512 is safe on v7x's 64 MiB VMEM; ~1024
    works fine on v5e/v6e's 128 MiB if serving very large batches).
    """
    B = x_nchw.shape[0]
    x2d = x_nchw.reshape(B, DIMS[0]).astype(jnp.bfloat16)   # == x.view(-1, 784)
    # Pad the contraction dim 784 -> 896 (exact zeros contribute nothing).
    x2d = jnp.pad(x2d, ((0, 0), (0, PAD_IN - DIMS[0])))

    # Batch tile: multiple of 8 (sublane), capped by batch_tile.
    tb = min(batch_tile, _round_up(B, 8))
    b_pad = _round_up(B, tb)
    if b_pad != B:
        x2d = jnp.pad(x2d, ((0, b_pad - B), (0, 0)))

    # Weights/biases: full-array blocks with a constant index_map so they are
    # fetched once and stay VMEM-resident across the batch grid.
    weight_specs = [pl.BlockSpec(a.shape, lambda i: (0, 0)) for a in flat_params]

    out = pl.pallas_call(
        mlp_kernel,
        out_shape=jax.ShapeDtypeStruct((b_pad, PAD_OUT), jnp.float32),
        grid_spec=pltpu.PrefetchScalarGridSpec(
            num_scalar_prefetch=0,
            grid=(b_pad // tb,),
            in_specs=[pl.BlockSpec((tb, PAD_IN), lambda i: (i, 0))] + weight_specs,
            out_specs=pl.BlockSpec((tb, PAD_OUT), lambda i: (i, 0)),
        ),
        compiler_params=pltpu.CompilerParams(
            dimension_semantics=("parallel",),   # shard batch across v7x's 2 TCs
            vmem_limit_bytes=32 << 20,           # few-MiB footprint; leave headroom
        ),
    )(x2d, *flat_params)

    return out[:B, :DIMS[5]]


def init_params(key):
    """Deterministic init matching the torch layer shapes.

    torch.nn.Linear(in, out) has weight (out, in); we keep (in, out) so the
    kernel does x @ W + b directly.  Weights are bf16, biases f32.
    """
    params = []
    for i in range(len(DIMS) - 1):
        key, kw, kb = jax.random.split(key, 3)
        fan_in, fan_out = DIMS[i], DIMS[i + 1]
        bound = 1.0 / jnp.sqrt(fan_in)
        w = jax.random.uniform(kw, (fan_in, fan_out), jnp.float32, -bound, bound)
        b = jax.random.uniform(kb, (1, fan_out), jnp.float32, -bound, bound)
        params.append((w.astype(jnp.bfloat16), b))
    return params


if __name__ == "__main__":
    key = jax.random.PRNGKey(0)
    key, kx = jax.random.split(key)

    # Small MNIST-like batch: (B=8, C=1, H=28, W=28) -> view(-1, 784)
    x = jax.random.normal(kx, (8, 1, 28, 28), dtype=jnp.float32)
    params = init_params(key)
    flat_params = prepare_params(params)      # pad once, reuse every call

    logits = net_forward(x, flat_params)
    jax.block_until_ready(logits)
    assert logits.shape == (8, 10)
    assert logits.dtype == jnp.float32

    # Sanity: same math (bf16 weights/activations, f32 accumulate) in plain JAX.
    h = x.reshape(8, DIMS[0]).astype(jnp.bfloat16)
    ref = None
    for i, (w, b) in enumerate(params):
        acc = jnp.dot(h, w, preferred_element_type=jnp.float32) + b
        if i < len(params) - 1:
            h = jnp.maximum(acc, 0.0).astype(jnp.bfloat16)
        else:
            ref = acc
    assert jnp.allclose(logits, ref, atol=2e-2, rtol=2e-2)

    print("KERNEL_OK")
</pallas_src>

<mosaic_0001>
module attributes {stable_mosaic.version = 11 : i64} {
  func.func @mlp_kernel(%arg0: i32, %arg1: memref<8x896xbf16, #tpu.memory_space<vmem>>, %arg2: memref<896x512xbf16, #tpu.memory_space<vmem>>, %arg3: memref<1x512xf32, #tpu.memory_space<vmem>>, %arg4: memref<512x256xbf16, #tpu.memory_space<vmem>>, %arg5: memref<1x256xf32, #tpu.memory_space<vmem>>, %arg6: memref<256x128xbf16, #tpu.memory_space<vmem>>, %arg7: memref<1x128xf32, #tpu.memory_space<vmem>>, %arg8: memref<128x128xbf16, #tpu.memory_space<vmem>>, %arg9: memref<1x128xf32, #tpu.memory_space<vmem>>, %arg10: memref<128x128xbf16, #tpu.memory_space<vmem>>, %arg11: memref<1x128xf32, #tpu.memory_space<vmem>>, %arg12: memref<8x128xf32, #tpu.memory_space<vmem>>) attributes {dimension_semantics = [#tpu.dimension_semantics<parallel>], iteration_bounds = array<i64: 1>, scalar_prefetch = 0 : i64, scratch_operands = 0 : i64, tpu.core_type = #tpu.core_type<tc>, window_params = [{transform_indices = @transform_0, window_bounds = array<i64: 8, 896>}, {pipeline_mode = #tpu.pipeline_mode<synchronous>, transform_indices = @transform_1, window_bounds = array<i64: 896, 512>}, {pipeline_mode = #tpu.pipeline_mode<synchronous>, transform_indices = @transform_2, window_bounds = array<i64: 1, 512>}, {pipeline_mode = #tpu.pipeline_mode<synchronous>, transform_indices = @transform_3, window_bounds = array<i64: 512, 256>}, {pipeline_mode = #tpu.pipeline_mode<synchronous>, transform_indices = @transform_4, window_bounds = array<i64: 1, 256>}, {pipeline_mode = #tpu.pipeline_mode<synchronous>, transform_indices = @transform_5, window_bounds = array<i64: 256, 128>}, {pipeline_mode = #tpu.pipeline_mode<synchronous>, transform_indices = @transform_6, window_bounds = array<i64: 1, 128>}, {pipeline_mode = #tpu.pipeline_mode<synchronous>, transform_indices = @transform_7, window_bounds = array<i64: 128, 128>}, {pipeline_mode = #tpu.pipeline_mode<synchronous>, transform_indices = @transform_8, window_bounds = array<i64: 1, 128>}, {pipeline_mode = #tpu.pipeline_mode<synchronous>, transform_indices = @transform_9, window_bounds = array<i64: 128, 128>}, {pipeline_mode = #tpu.pipeline_mode<synchronous>, transform_indices = @transform_10, window_bounds = array<i64: 1, 128>}, {transform_indices = @transform_11, window_bounds = array<i64: 8, 128>}]} {
    %c0 = arith.constant 0 : index
    %c0_0 = arith.constant 0 : index
    %0 = vector.load %arg1[%c0, %c0_0] : memref<8x896xbf16, #tpu.memory_space<vmem>>, vector<8x896xbf16>
    %c0_1 = arith.constant 0 : index
    %c0_2 = arith.constant 0 : index
    %1 = vector.load %arg2[%c0_1, %c0_2] : memref<896x512xbf16, #tpu.memory_space<vmem>>, vector<896x512xbf16>
    %cst = arith.constant dense<0.000000e+00> : vector<8x512xf32>
    %2 = tpu.matmul %0, %1, %cst {dimension_numbers = #tpu.dot_dimension_numbers<[1], [0], [0], [1], [0, 0, 1, 1], [], []>} : vector<8x896xbf16>, vector<896x512xbf16>, vector<8x512xf32> -> vector<8x512xf32>
    %c0_3 = arith.constant 0 : index
    %c0_4 = arith.constant 0 : index
    %3 = vector.load %arg3[%c0_3, %c0_4] : memref<1x512xf32, #tpu.memory_space<vmem>>, vector<1x512xf32>
    %4 = vector.broadcast %3 : vector<1x512xf32> to vector<8x512xf32>
    %5 = arith.addf %2, %4 : vector<8x512xf32>
    %cst_5 = arith.constant 0.000000e+00 : f32
    %6 = vector.broadcast %cst_5 : f32 to vector<8x512xf32>
    %7 = arith.maximumf %5, %6 : vector<8x512xf32>
    %8 = arith.truncf %7 : vector<8x512xf32> to vector<8x512xbf16>
    %c0_6 = arith.constant 0 : index
    %c0_7 = arith.constant 0 : index
    %9 = vector.load %arg4[%c0_6, %c0_7] : memref<512x256xbf16, #tpu.memory_space<vmem>>, vector<512x256xbf16>
    %cst_8 = arith.constant dense<0.000000e+00> : vector<8x256xf32>
    %10 = tpu.matmul %8, %9, %cst_8 {dimension_numbers = #tpu.dot_dimension_numbers<[1], [0], [0], [1], [0, 0, 1, 1], [], []>} : vector<8x512xbf16>, vector<512x256xbf16>, vector<8x256xf32> -> vector<8x256xf32>
    %c0_9 = arith.constant 0 : index
    %c0_10 = arith.constant 0 : index
    %11 = vector.load %arg5[%c0_9, %c0_10] : memref<1x256xf32, #tpu.memory_space<vmem>>, vector<1x256xf32>
    %12 = vector.broadcast %11 : vector<1x256xf32> to vector<8x256xf32>
    %13 = arith.addf %10, %12 : vector<8x256xf32>
    %cst_11 = arith.constant 0.000000e+00 : f32
    %14 = vector.broadcast %cst_11 : f32 to vector<8x256xf32>
    %15 = arith.maximumf %13, %14 : vector<8x256xf32>
    %16 = arith.truncf %15 : vector<8x256xf32> to vector<8x256xbf16>
    %c0_12 = arith.constant 0 : index
    %c0_13 = arith.constant 0 : index
    %17 = vector.load %arg6[%c0_12, %c0_13] : memref<256x128xbf16, #tpu.memory_space<vmem>>, vector<256x128xbf16>
    %cst_14 = arith.constant dense<0.000000e+00> : vector<8x128xf32>
    %18 = tpu.matmul %16, %17, %cst_14 {dimension_numbers = #tpu.dot_dimension_numbers<[1], [0], [0], [1], [0, 0, 1, 1], [], []>} : vector<8x256xbf16>, vector<256x128xbf16>, vector<8x128xf32> -> vector<8x128xf32>
    %c0_15 = arith.constant 0 : index
    %c0_16 = arith.constant 0 : index
    %19 = vector.load %arg7[%c0_15, %c0_16] : memref<1x128xf32, #tpu.memory_space<vmem>>, vector<1x128xf32>
    %20 = vector.broadcast %19 : vector<1x128xf32> to vector<8x128xf32>
    %21 = arith.addf %18, %20 : vector<8x128xf32>
    %cst_17 = arith.constant 0.000000e+00 : f32
    %22 = vector.broadcast %cst_17 : f32 to vector<8x128xf32>
    %23 = arith.maximumf %21, %22 : vector<8x128xf32>
    %24 = arith.truncf %23 : vector<8x128xf32> to vector<8x128xbf16>
    %c0_18 = arith.constant 0 : index
    %c0_19 = arith.constant 0 : index
    %25 = vector.load %arg8[%c0_18, %c0_19] : memref<128x128xbf16, #tpu.memory_space<vmem>>, vector<128x128xbf16>
    %cst_20 = arith.constant dense<0.000000e+00> : vector<8x128xf32>
    %26 = tpu.matmul %24, %25, %cst_20 {dimension_numbers = #tpu.dot_dimension_numbers<[1], [0], [0], [1], [0, 0, 1, 1], [], []>} : vector<8x128xbf16>, vector<128x128xbf16>, vector<8x128xf32> -> vector<8x128xf32>
    %c0_21 = arith.constant 0 : index
    %c0_22 = arith.constant 0 : index
    %27 = vector.load %arg9[%c0_21, %c0_22] : memref<1x128xf32, #tpu.memory_space<vmem>>, vector<1x128xf32>
    %28 = vector.broadcast %27 : vector<1x128xf32> to vector<8x128xf32>
    %29 = arith.addf %26, %28 : vector<8x128xf32>
    %cst_23 = arith.constant 0.000000e+00 : f32
    %30 = vector.broadcast %cst_23 : f32 to vector<8x128xf32>
    %31 = arith.maximumf %29, %30 : vector<8x128xf32>
    %32 = arith.truncf %31 : vector<8x128xf32> to vector<8x128xbf16>
    %c0_24 = arith.constant 0 : index
    %c0_25 = arith.constant 0 : index
    %33 = vector.load %arg10[%c0_24, %c0_25] : memref<128x128xbf16, #tpu.memory_space<vmem>>, vector<128x128xbf16>
    %cst_26 = arith.constant dense<0.000000e+00> : vector<8x128xf32>
    %34 = tpu.matmul %32, %33, %cst_26 {dimension_numbers = #tpu.dot_dimension_numbers<[1], [0], [0], [1], [0, 0, 1, 1], [], []>} : vector<8x128xbf16>, vector<128x128xbf16>, vector<8x128xf32> -> vector<8x128xf32>
    %c0_27 = arith.constant 0 : index
    %c0_28 = arith.constant 0 : index
    %35 = vector.load %arg11[%c0_27, %c0_28] : memref<1x128xf32, #tpu.memory_space<vmem>>, vector<1x128xf32>
    %36 = vector.broadcast %35 : vector<1x128xf32> to vector<8x128xf32>
    %37 = arith.addf %34, %36 : vector<8x128xf32>
    %c0_29 = arith.constant 0 : index
    %c0_30 = arith.constant 0 : index
    %38 = vector.load %arg12[%c0_29, %c0_30] : memref<8x128xf32, #tpu.memory_space<vmem>>, vector<8x128xf32>
    tpu.vector_store %arg12[%c0_29, %c0_30], %37 {strides = array<i32>} : memref<8x128xf32, #tpu.memory_space<vmem>>, vector<8x128xf32>,
    return
  }
  func.func @transform_0(%arg0: i32) -> (i32, i32) {
    %c0_i32 = arith.constant 0 : i32
    %c0_i32_0 = arith.constant 0 : i32
    return %arg0, %c0_i32 : i32, i32
  }
  func.func @transform_1(%arg0: i32) -> (i32, i32) {
    %c0_i32 = arith.constant 0 : i32
    %c0_i32_0 = arith.constant 0 : i32
    %c0_i32_1 = arith.constant 0 : i32
    return %c0_i32, %c0_i32_0 : i32, i32
  }
  func.func @transform_2(%arg0: i32) -> (i32, i32) {
    %c0_i32 = arith.constant 0 : i32
    %c0_i32_0 = arith.constant 0 : i32
    %c0_i32_1 = arith.constant 0 : i32
    return %c0_i32, %c0_i32_0 : i32, i32
  }
  func.func @transform_3(%arg0: i32) -> (i32, i32) {
    %c0_i32 = arith.constant 0 : i32
    %c0_i32_0 = arith.constant 0 : i32
    %c0_i32_1 = arith.constant 0 : i32
    return %c0_i32, %c0_i32_0 : i32, i32
  }
  func.func @transform_4(%arg0: i32) -> (i32, i32) {
    %c0_i32 = arith.constant 0 : i32
    %c0_i32_0 = arith.constant 0 : i32
    %c0_i32_1 = arith.constant 0 : i32
    return %c0_i32, %c0_i32_0 : i32, i32
  }
  func.func @transform_5(%arg0: i32) -> (i32, i32) {
    %c0_i32 = arith.constant 0 : i32
    %c0_i32_0 = arith.constant 0 : i32
    %c0_i32_1 = arith.constant 0 : i32
    return %c0_i32, %c0_i32_0 : i32, i32
  }
  func.func @transform_6(%arg0: i32) -> (i32, i32) {
    %c0_i32 = arith.constant 0 : i32
    %c0_i32_0 = arith.constant 0 : i32
    %c0_i32_1 = arith.constant 0 : i32
    return %c0_i32, %c0_i32_0 : i32, i32
  }
  func.func @transform_7(%arg0: i32) -> (i32, i32) {
    %c0_i32 = arith.constant 0 : i32
    %c0_i32_0 = arith.constant 0 : i32
    %c0_i32_1 = arith.constant 0 : i32
    return %c0_i32, %c0_i32_0 : i32, i32
  }
  func.func @transform_8(%arg0: i32) -> (i32, i32) {
    %c0_i32 = arith.constant 0 : i32
    %c0_i32_0 = arith.constant 0 : i32
    %c0_i32_1 = arith.constant 0 : i32
    return %c0_i32, %c0_i32_0 : i32, i32
  }
  func.func @transform_9(%arg0: i32) -> (i32, i32) {
    %c0_i32 = arith.constant 0 : i32
    %c0_i32_0 = arith.constant 0 : i32
    %c0_i32_1 = arith.constant 0 : i32
    return %c0_i32, %c0_i32_0 : i32, i32
  }
  func.func @transform_10(%arg0: i32) -> (i32, i32) {
    %c0_i32 = arith.constant 0 : i32
    %c0_i32_0 = arith.constant 0 : i32
    %c0_i32_1 = arith.constant 0 : i32
    return %c0_i32, %c0_i32_0 : i32, i32
  }
  func.func @transform_11(%arg0: i32) -> (i32, i32) {
    %c0_i32 = arith.constant 0 : i32
    %c0_i32_0 = arith.constant 0 : i32
    return %arg0, %c0_i32 : i32, i32
  }
}

</mosaic_0001>

<llo_original>
// kernel: net_forward.1
$region0: #{net_forward.1}
  #allocation0 [shape = 'u32[]', space=smem, size = 0x4, offset = 0x4, fixed_abs, tag = 'smem constant byte address 0x4 - core index']
  #allocation1 [shape = 'u32[144,128]{1,0:T(1,128)}', space=vmem, size = 0x12000, scoped, tag = 'internal scratch']
  %s0 = inlined_call_operand.vmem [shape: bf16[8,896], index: 0, kind: input, shape index: {}]
  %s1 = inlined_call_operand.hbm [shape: bf16[896,512], index: 1, kind: input, shape index: {}]
  %s2 = inlined_call_operand.hbm [shape: f32[1,512], index: 2, kind: input, shape index: {}]
  %s3 = inlined_call_operand.vmem [shape: bf16[512,256], index: 3, kind: input, shape index: {}]
  %s4 = inlined_call_operand.vmem [shape: f32[1,256], index: 4, kind: input, shape index: {}]
  %s5 = inlined_call_operand.hbm [shape: bf16[256,128], index: 5, kind: input, shape index: {}]
  %s6 = inlined_call_operand.vmem [shape: f32[1,128], index: 6, kind: input, shape index: {}]
  %s7 = inlined_call_operand.hbm [shape: bf16[128,128], index: 7, kind: input, shape index: {}]
  %s8 = inlined_call_operand.hbm [shape: f32[1,128], index: 8, kind: input, shape index: {}]
  %s9 = inlined_call_operand.vmem [shape: bf16[128,128], index: 9, kind: input, shape index: {}]
  %s10 = inlined_call_operand.hbm [shape: f32[1,128], index: 10, kind: input, shape index: {}]
  %s11 = inlined_call_operand.hbm [shape: f32[8,128], index: 11, kind: output, shape index: {}]
  %s12 = sld [smem:[#allocation0]]
  $region78: #{net_forward.1} parent=0
    _
  %s14 = ssub.s32 1, %s12
  %s15 = scalar_select 0, %s14, %s12
  $region1: #{net_forward.1} parent=0
    #allocation2 [shape = 'u8[917504]{0}', space=vmem, size = 0xe0000, scoped, tag = 'input window, operand 1, single buffered']
    #allocation3 [shape = 's32[1]{0}', space=sflag, size = 0x4, scoped, tag = 'scoped memory for net_forward.1']
    #allocation4 [shape = 's32[1]{0}', space=sflag, size = 0x4, scoped, tag = 'scoped memory for net_forward.1']
    #allocation5 [shape = 'u8[2048]{0}', space=vmem, size = 0x800, scoped, tag = 'input window, operand 2, single buffered']
    #allocation6 [shape = 's32[1]{0}', space=sflag, size = 0x4, scoped, tag = 'scoped memory for net_forward.1']
    #allocation7 [shape = 'u8[65536]{0}', space=vmem, size = 0x10000, scoped, tag = 'input window, operand 5, single buffered']
    #allocation8 [shape = 'u8[32768]{0}', space=vmem, size = 0x8000, scoped, tag = 'input window, operand 7, single buffered']
    #allocation9 [shape = 's32[1]{0}', space=sflag, size = 0x4, scoped, tag = 'scoped memory for net_forward.1']
    #allocation10 [shape = 'u8[512]{0}', space=vmem, size = 0x400, scoped, tag = 'input window, operand 8, single buffered']
    #allocation11 [shape = 'u8[512]{0}', space=vmem, size = 0x400, scoped, tag = 'input window, operand 10, single buffered']
    #allocation12 [shape = 's32[1]{0}', space=sflag, size = 0x4, scoped, tag = 'scoped memory for net_forward.1']
    #allocation13 [shape = 'u8[4096]{0}', space=vmem, size = 0x1000, scoped, tag = 'output window, operand 0, single buffered']
    %16 = vsyncpa [#allocation3], 0
    %17 = vsyncpa [#allocation6], 0
    %18 = vsyncpa [#allocation9], 0
    %19 = vsyncpa [#allocation12], 0
    %20 = vsyncpa [#allocation4], 0
    // Predicated region
    $region2: #{net_forward.1} parent=1 // pred_check
      _
    $region3: #{net_forward.1} parent=1 // pred_check_branch
      %22 = sbr.rel (0) target = $region5
    $region4: #{net_forward.1} parent=1 // pred_region
      _
    $region5: #{net_forward.1} parent=1 // pred_fallthru
      _
    // Predicated region
    $region6: #{net_forward.1} parent=1 // pred_check
      _
    $region7: #{net_forward.1} parent=1 // pred_check_branch
      %24 = sbr.rel (0) target = $region9
    $region8: #{net_forward.1} parent=1 // pred_region
      %s26 = ssub.s32 28672, 28672
      %27 = vsyncadd [#allocation3], %s26
      %s28 = sshll.u32 [#allocation2], 4
      %s29 = int_to_ptr.vmem [resolvable:$true] %s28
      %34 = dma.hbm_to_vmem [thread:$0]  %s1, 28672, %s29, [#allocation3], 256, 256, 16
    $region9: #{net_forward.1} parent=1 // pred_fallthru
      _
    // Predicated region
    $region10: #{net_forward.1} parent=1 // pred_check
      _
    $region11: #{net_forward.1} parent=1 // pred_check_branch
      %36 = sbr.rel (0) target = $region13
    $region12: #{net_forward.1} parent=1 // pred_region
      %s38 = ssub.s32 64, 64
      %39 = vsyncadd [#allocation6], %s38
      %s41 = sshll.u32 [#allocation5], 4
      %s42 = int_to_ptr.vmem [resolvable:$true] %s41
      %44 = dma.hbm_to_vmem [thread:$0]  %s2, 64, %s42, [#allocation6]
    $region13: #{net_forward.1} parent=1 // pred_fallthru
      _
    // Predicated region
    $region14: #{net_forward.1} parent=1 // pred_check
      _
    $region15: #{net_forward.1} parent=1 // pred_check_branch
      %46 = sbr.rel (0) target = $region17
    $region16: #{net_forward.1} parent=1 // pred_region
      _
    $region17: #{net_forward.1} parent=1 // pred_fallthru
      _
    // Predicated region
    $region18: #{net_forward.1} parent=1 // pred_check
      _
    $region19: #{net_forward.1} parent=1 // pred_check_branch
      %48 = sbr.rel (0) target = $region21
    $region20: #{net_forward.1} parent=1 // pred_region
      _
    $region21: #{net_forward.1} parent=1 // pred_fallthru
      _
    // Predicated region
    $region22: #{net_forward.1} parent=1 // pred_check
      _
    $region23: #{net_forward.1} parent=1 // pred_check_branch
      %50 = sbr.rel (0) target = $region25
    $region24: #{net_forward.1} parent=1 // pred_region
      %s52 = ssub.s32 2048, 2048
      %53 = vsyncadd [#allocation6], %s52
      %s54 = sshll.u32 [#allocation7], 4
      %s55 = int_to_ptr.vmem [resolvable:$true] %s54
      %60 = dma.hbm_to_vmem [thread:$0]  %s5, 2048, %s55, [#allocation6], 64, 64, 4
    $region25: #{net_forward.1} parent=1 // pred_fallthru
      _
    // Predicated region
    $region26: #{net_forward.1} parent=1 // pred_check
      _
    $region27: #{net_forward.1} parent=1 // pred_check_branch
      %62 = sbr.rel (0) target = $region29
    $region28: #{net_forward.1} parent=1 // pred_region
      _
    $region29: #{net_forward.1} parent=1 // pred_fallthru
      _
    // Predicated region
    $region30: #{net_forward.1} parent=1 // pred_check
      _
    $region31: #{net_forward.1} parent=1 // pred_check_branch
      %64 = sbr.rel (0) target = $region33
    $region32: #{net_forward.1} parent=1 // pred_region
      %s66 = ssub.s32 1024, 1024
      %67 = vsyncadd [#allocation9], %s66
      %s68 = sshll.u32 [#allocation8], 4
      %s69 = int_to_ptr.vmem [resolvable:$true] %s68
      %74 = dma.hbm_to_vmem [thread:$0]  %s7, 1024, %s69, [#allocation9], 64, 64, 4
    $region33: #{net_forward.1} parent=1 // pred_fallthru
      _
    // Predicated region
    $region34: #{net_forward.1} parent=1 // pred_check
      _
    $region35: #{net_forward.1} parent=1 // pred_check_branch
      %76 = sbr.rel (0) target = $region37
    $region36: #{net_forward.1} parent=1 // pred_region
      %s78 = ssub.s32 16, 16
      %79 = vsyncadd [#allocation9], %s78
      %s81 = sshll.u32 [#allocation10], 4
      %s82 = int_to_ptr.vmem [resolvable:$true] %s81
      %84 = dma.hbm_to_vmem [thread:$0]  %s8, 16, %s82, [#allocation9]
    $region37: #{net_forward.1} parent=1 // pred_fallthru
      _
    // Predicated region
    $region38: #{net_forward.1} parent=1 // pred_check
      _
    $region39: #{net_forward.1} parent=1 // pred_check_branch
      %86 = sbr.rel (0) target = $region41
    $region40: #{net_forward.1} parent=1 // pred_region
      _
    $region41: #{net_forward.1} parent=1 // pred_fallthru
      _
    // Predicated region
    $region42: #{net_forward.1} parent=1 // pred_check
      _
    $region43: #{net_forward.1} parent=1 // pred_check_branch
      %88 = sbr.rel (0) target = $region45
    $region44: #{net_forward.1} parent=1 // pred_region
      %s90 = ssub.s32 16, 16
      %91 = vsyncadd [#allocation12], %s90
      %s93 = sshll.u32 [#allocation11], 4
      %s94 = int_to_ptr.vmem [resolvable:$true] %s93
      %96 = dma.hbm_to_vmem [thread:$0]  %s10, 16, %s94, [#allocation12]
    $region45: #{net_forward.1} parent=1 // pred_fallthru
      _
    // Predicated region
    $region46: #{net_forward.1} parent=1 // pred_check
      _
    $region47: #{net_forward.1} parent=1 // pred_check_branch
      %98 = sbr.rel (0) target = $region49
    $region48: #{net_forward.1} parent=1 // pred_region
      %99 = dma.done [#allocation3], 28672
    $region49: #{net_forward.1} parent=1 // pred_fallthru
      _
    // Predicated region
    $region50: #{net_forward.1} parent=1 // pred_check
      _
    $region51: #{net_forward.1} parent=1 // pred_check_branch
      %101 = sbr.rel (0) target = $region53
    $region52: #{net_forward.1} parent=1 // pred_region
      %102 = dma.done [#allocation6], 64
    $region53: #{net_forward.1} parent=1 // pred_fallthru
      _
    // Predicated region
    $region54: #{net_forward.1} parent=1 // pred_check
      _
    $region55: #{net_forward.1} parent=1 // pred_check_branch
      %104 = sbr.rel (0) target = $region57
    $region56: #{net_forward.1} parent=1 // pred_region
      %105 = dma.done [#allocation6], 2048
    $region57: #{net_forward.1} parent=1 // pred_fallthru
      _
    // Predicated region
    $region58: #{net_forward.1} parent=1 // pred_check
      _
    $region59: #{net_forward.1} parent=1 // pred_check_branch
      %107 = sbr.rel (0) target = $region61
    $region60: #{net_forward.1} parent=1 // pred_region
      %108 = dma.done [#allocation9], 1024
    $region61: #{net_forward.1} parent=1 // pred_fallthru
      _
    // Predicated region
    $region62: #{net_forward.1} parent=1 // pred_check
      _
    $region63: #{net_forward.1} parent=1 // pred_check_branch
      %110 = sbr.rel (0) target = $region65
    $region64: #{net_forward.1} parent=1 // pred_region
      %111 = dma.done [#allocation9], 16
    $region65: #{net_forward.1} parent=1 // pred_fallthru
      _
    // Predicated region
    $region66: #{net_forward.1} parent=1 // pred_check
      _
    $region67: #{net_forward.1} parent=1 // pred_check_branch
      %113 = sbr.rel (0) target = $region69
    $region68: #{net_forward.1} parent=1 // pred_region
      %114 = dma.done [#allocation12], 16
    $region69: #{net_forward.1} parent=1 // pred_fallthru
      _
    %v116 = vld [vmem:[%s0] sm:$0xff]
    %v117 = vld [vmem:[%s0 + $0x8] sm:$0xff]
    %v118 = vld [vmem:[%s0 + $0x10] sm:$0xff]
    %v119 = vld [vmem:[%s0 + $0x18] sm:$0xf]
    %v120 = vld [vmem:[#allocation2] sm:$0xff]
    %v121 = vld [vmem:[#allocation2 + $0x8] sm:$0xff]
    %v122 = vld [vmem:[#allocation2 + $0x10] sm:$0xff]
    %v123 = vld [vmem:[#allocation2 + $0x18] sm:$0xff]
    %v124 = vld [vmem:[#allocation2 + $0x20] sm:$0xff]
    %v125 = vld [vmem:[#allocation2 + $0x28] sm:$0xff]
    %v126 = vld [vmem:[#allocation2 + $0x30] sm:$0xff]
    %v127 = vld [vmem:[#allocation2 + $0x38] sm:$0xff]
    %v128 = vld [vmem:[#allocation2 + $0x40] sm:$0xff]
    %v129 = vld [vmem:[#allocation2 + $0x48] sm:$0xff]
    %v130 = vld [vmem:[#allocation2 + $0x50] sm:$0xff]
    %v131 = vld [vmem:[#allocation2 + $0x58] sm:$0xff]
    %v132 = vld [vmem:[#allocation2 + $0x60] sm:$0xff]
    %v133 = vld [vmem:[#allocation2 + $0x68] sm:$0xff]
    %v134 = vld [vmem:[#allocation2 + $0x70] sm:$0xff]
    %v135 = vld [vmem:[#allocation2 + $0x78] sm:$0xff]
    %v136 = vld [vmem:[#allocation2 + $0x80] sm:$0xff]
    %v137 = vld [vmem:[#allocation2 + $0x88] sm:$0xff]
    %v138 = vld [vmem:[#allocation2 + $0x90] sm:$0xff]
    %v139 = vld [vmem:[#allocation2 + $0x98] sm:$0xff]
    %v140 = vld [vmem:[#allocation2 + $0xa0] sm:$0xff]
    %v141 = vld [vmem:[#allocation2 + $0xa8] sm:$0xff]
    %v142 = vld [vmem:[#allocation2 + $0xb0] sm:$0xff]
    %v143 = vld [vmem:[#allocation2 + $0xb8] sm:$0xff]
    %v144 = vld [vmem:[#allocation2 + $0xc0] sm:$0xff]
    %v145 = vld [vmem:[#allocation2 + $0xc8] sm:$0xff]
    %v146 = vld [vmem:[#allocation2 + $0xd0] sm:$0xff]
    %v147 = vld [vmem:[#allocation2 + $0xd8] sm:$0xff]
    %v148 = vld [vmem:[#allocation2 + $0xe0] sm:$0xff]
    %v149 = vld [vmem:[#allocation2 + $0xe8] sm:$0xff]
    %v150 = vld [vmem:[#allocation2 + $0xf0] sm:$0xff]
    %v151 = vld [vmem:[#allocation2 + $0xf8] sm:$0xff]
    %v152 = vld [vmem:[#allocation2 + $0x100] sm:$0xff]
    %v153 = vld [vmem:[#allocation2 + $0x108] sm:$0xff]
    %v154 = vld [vmem:[#allocation2 + $0x110] sm:$0xff]
    %v155 = vld [vmem:[#allocation2 + $0x118] sm:$0xff]
    %v156 = vld [vmem:[#allocation2 + $0x120] sm:$0xff]
    %v157 = vld [vmem:[#allocation2 + $0x128] sm:$0xff]
    %v158 = vld [vmem:[#allocation2 + $0x130] sm:$0xff]
    %v159 = vld [vmem:[#allocation2 + $0x138] sm:$0xff]
    %v160 = vld [vmem:[#allocation2 + $0x140] sm:$0xff]
    %v161 = vld [vmem:[#allocation2 + $0x148] sm:$0xff]
    %v162 = vld [vmem:[#allocation2 + $0x150] sm:$0xff]
    %v163 = vld [vmem:[#allocation2 + $0x158] sm:$0xff]
    %v164 = vld [vmem:[#allocation2 + $0x160] sm:$0xff]
    %v165 = vld [vmem:[#allocation2 + $0x168] sm:$0xff]
    %v166 = vld [vmem:[#allocation2 + $0x170] sm:$0xff]
    %v167 = vld [vmem:[#allocation2 + $0x178] sm:$0xff]
    %v168 = vld [vmem:[#allocation2 + $0x180] sm:$0xff]
    %v169 = vld [vmem:[#allocation2 + $0x188] sm:$0xff]
    %v170 = vld [vmem:[#allocation2 + $0x190] sm:$0xff]
    %v171 = vld [vmem:[#allocation2 + $0x198] sm:$0xff]
    %v172 = vld [vmem:[#allocation2 + $0x1a0] sm:$0xff]
    %v173 = vld [vmem:[#allocation2 + $0x1a8] sm:$0xff]
    %v174 = vld [vmem:[#allocation2 + $0x1b0] sm:$0xff]
    %v175 = vld [vmem:[#allocation2 + $0x1b8] sm:$0xff]
    %v176 = vld [vmem:[#allocation2 + $0x1c0] sm:$0xff]
    %v177 = vld [vmem:[#allocation2 + $0x1c8] sm:$0xff]
    %v178 = vld [vmem:[#allocation2 + $0x1d0] sm:$0xff]
    %v179 = vld [vmem:[#allocation2 + $0x1d8] sm:$0xff]
    %v180 = vld [vmem:[#allocation2 + $0x1e0] sm:$0xff]
    %v181 = vld [vmem:[#allocation2 + $0x1e8] sm:$0xff]
    %v182 = vld [vmem:[#allocation2 + $0x1f0] sm:$0xff]
    %v183 = vld [vmem:[#allocation2 + $0x1f8] sm:$0xff]
    %v184 = vld [vmem:[#allocation2 + $0x200] sm:$0xff]
    %v185 = vld [vmem:[#allocation2 + $0x208] sm:$0xff]
    %v186 = vld [vmem:[#allocation2 + $0x210] sm:$0xff]
    %v187 = vld [vmem:[#allocation2 + $0x218] sm:$0xff]
    %v188 = vld [vmem:[#allocation2 + $0x220] sm:$0xff]
    %v189 = vld [vmem:[#allocation2 + $0x228] sm:$0xff]
    %v190 = vld [vmem:[#allocation2 + $0x230] sm:$0xff]
    %v191 = vld [vmem:[#allocation2 + $0x238] sm:$0xff]
    %v192 = vld [vmem:[#allocation2 + $0x240] sm:$0xff]
    %v193 = vld [vmem:[#allocation2 + $0x248] sm:$0xff]
    %v194 = vld [vmem:[#allocation2 + $0x250] sm:$0xff]
    %v195 = vld [vmem:[#allocation2 + $0x258] sm:$0xff]
    %v196 = vld [vmem:[#allocation2 + $0x260] sm:$0xff]
    %v197 = vld [vmem:[#allocation2 + $0x268] sm:$0xff]
    %v198 = vld [vmem:[#allocation2 + $0x270] sm:$0xff]
    %v199 = vld [vmem:[#allocation2 + $0x278] sm:$0xff]
    %v200 = vld [vmem:[#allocation2 + $0x280] sm:$0xff]
    %v201 = vld [vmem:[#allocation2 + $0x288] sm:$0xff]
    %v202 = vld [vmem:[#allocation2 + $0x290] sm:$0xff]
    %v203 = vld [vmem:[#allocation2 + $0x298] sm:$0xff]
    %v204 = vld [vmem:[#allocation2 + $0x2a0] sm:$0xff]
    %v205 = vld [vmem:[#allocation2 + $0x2a8] sm:$0xff]
    %v206 = vld [vmem:[#allocation2 + $0x2b0] sm:$0xff]
    %v207 = vld [vmem:[#allocation2 + $0x2b8] sm:$0xff]
    %v208 = vld [vmem:[#allocation2 + $0x2c0] sm:$0xff]
    %v209 = vld [vmem:[#allocation2 + $0x2c8] sm:$0xff]
    %v210 = vld [vmem:[#allocation2 + $0x2d0] sm:$0xff]
    %v211 = vld [vmem:[#allocation2 + $0x2d8] sm:$0xff]
    %v212 = vld [vmem:[#allocation2 + $0x2e0] sm:$0xff]
    %v213 = vld [vmem:[#allocation2 + $0x2e8] sm:$0xff]
    %v214 = vld [vmem:[#allocation2 + $0x2f0] sm:$0xff]
    %v215 = vld [vmem:[#allocation2 + $0x2f8] sm:$0xff]
    %v216 = vld [vmem:[#allocation2 + $0x300] sm:$0xff]
    %v217 = vld [vmem:[#allocation2 + $0x308] sm:$0xff]
    %v218 = vld [vmem:[#allocation2 + $0x310] sm:$0xff]
    %v219 = vld [vmem:[#allocation2 + $0x318] sm:$0xff]
    %v220 = vld [vmem:[#allocation2 + $0x320] sm:$0xff]
    %v221 = vld [vmem:[#allocation2 + $0x328] sm:$0xff]
    %v222 = vld [vmem:[#allocation2 + $0x330] sm:$0xff]
    %v223 = vld [vmem:[#allocation2 + $0x338] sm:$0xff]
    %v224 = vld [vmem:[#allocation2 + $0x340] sm:$0xff]
    %v225 = vld [vmem:[#allocation2 + $0x348] sm:$0xff]
    %v226 = vld [vmem:[#allocation2 + $0x350] sm:$0xff]
    %v227 = vld [vmem:[#allocation2 + $0x358] sm:$0xff]
    %v228 = vld [vmem:[#allocation2 + $0x360] sm:$0xff]
    %v229 = vld [vmem:[#allocation2 + $0x368] sm:$0xff]
    %v230 = vld [vmem:[#allocation2 + $0x370] sm:$0xff]
    %v231 = vld [vmem:[#allocation2 + $0x378] sm:$0xff]
    %v232 = vld [vmem:[#allocation2 + $0x380] sm:$0xff]
    %v233 = vld [vmem:[#allocation2 + $0x388] sm:$0xff]
    %v234 = vld [vmem:[#allocation2 + $0x390] sm:$0xff]
    %v235 = vld [vmem:[#allocation2 + $0x398] sm:$0xff]
    %v236 = vld [vmem:[#allocation2 + $0x3a0] sm:$0xff]
    %v237 = vld [vmem:[#allocation2 + $0x3a8] sm:$0xff]
    %v238 = vld [vmem:[#allocation2 + $0x3b0] sm:$0xff]
    %v239 = vld [vmem:[#allocation2 + $0x3b8] sm:$0xff]
    %v240 = vld [vmem:[#allocation2 + $0x3c0] sm:$0xff]
    %v241 = vld [vmem:[#allocation2 + $0x3c8] sm:$0xff]
    %v242 = vld [vmem:[#allocation2 + $0x3d0] sm:$0xff]
    %v243 = vld [vmem:[#allocation2 + $0x3d8] sm:$0xff]
    %v244 = vld [vmem:[#allocation2 + $0x3e0] sm:$0xff]
    %v245 = vld [vmem:[#allocation2 + $0x3e8] sm:$0xff]
    %v246 = vld [vmem:[#allocation2 + $0x3f0] sm:$0xff]
    %v247 = vld [vmem:[#allocation2 + $0x3f8] sm:$0xff]
    %v248 = vld [vmem:[#allocation2 + $0x400] sm:$0xff]
    %v249 = vld [vmem:[#allocation2 + $0x408] sm:$0xff]
    %v250 = vld [vmem:[#allocation2 + $0x410] sm:$0xff]
    %v251 = vld [vmem:[#allocation2 + $0x418] sm:$0xff]
    %v252 = vld [vmem:[#allocation2 + $0x420] sm:$0xff]
    %v253 = vld [vmem:[#allocation2 + $0x428] sm:$0xff]
    %v254 = vld [vmem:[#allocation2 + $0x430] sm:$0xff]
    %v255 = vld [vmem:[#allocation2 + $0x438] sm:$0xff]
    %v256 = vld [vmem:[#allocation2 + $0x440] sm:$0xff]
    %v257 = vld [vmem:[#allocation2 + $0x448] sm:$0xff]
    %v258 = vld [vmem:[#allocation2 + $0x450] sm:$0xff]
    %v259 = vld [vmem:[#allocation2 + $0x458] sm:$0xff]
    %v260 = vld [vmem:[#allocation2 + $0x460] sm:$0xff]
    %v261 = vld [vmem:[#allocation2 + $0x468] sm:$0xff]
    %v262 = vld [vmem:[#allocation2 + $0x470] sm:$0xff]
    %v263 = vld [vmem:[#allocation2 + $0x478] sm:$0xff]
    %v264 = vld [vmem:[#allocation2 + $0x480] sm:$0xff]
    %v265 = vld [vmem:[#allocation2 + $0x488] sm:$0xff]
    %v266 = vld [vmem:[#allocation2 + $0x490] sm:$0xff]
    %v267 = vld [vmem:[#allocation2 + $0x498] sm:$0xff]
    %v268 = vld [vmem:[#allocation2 + $0x4a0] sm:$0xff]
    %v269 = vld [vmem:[#allocation2 + $0x4a8] sm:$0xff]
    %v270 = vld [vmem:[#allocation2 + $0x4b0] sm:$0xff]
    %v271 = vld [vmem:[#allocation2 + $0x4b8] sm:$0xff]
    %v272 = vld [vmem:[#allocation2 + $0x4c0] sm:$0xff]
    %v273 = vld [vmem:[#allocation2 + $0x4c8] sm:$0xff]
    %v274 = vld [vmem:[#allocation2 + $0x4d0] sm:$0xff]
    %v275 = vld [vmem:[#allocation2 + $0x4d8] sm:$0xff]
    %v276 = vld [vmem:[#allocation2 + $0x4e0] sm:$0xff]
    %v277 = vld [vmem:[#allocation2 + $0x4e8] sm:$0xff]
    %v278 = vld [vmem:[#allocation2 + $0x4f0] sm:$0xff]
    %v279 = vld [vmem:[#allocation2 + $0x4f8] sm:$0xff]
    %v280 = vld [vmem:[#allocation2 + $0x500] sm:$0xff]
    %v281 = vld [vmem:[#allocation2 + $0x508] sm:$0xff]
    %v282 = vld [vmem:[#allocation2 + $0x510] sm:$0xff]
    %v283 = vld [vmem:[#allocation2 + $0x518] sm:$0xff]
    %v284 = vld [vmem:[#allocation2 + $0x520] sm:$0xff]
    %v285 = vld [vmem:[#allocation2 + $0x528] sm:$0xff]
    %v286 = vld [vmem:[#allocation2 + $0x530] sm:$0xff]
    %v287 = vld [vmem:[#allocation2 + $0x538] sm:$0xff]
    %v288 = vld [vmem:[#allocation2 + $0x540] sm:$0xff]
    %v289 = vld [vmem:[#allocation2 + $0x548] sm:$0xff]
    %v290 = vld [vmem:[#allocation2 + $0x550] sm:$0xff]
    %v291 = vld [vmem:[#allocation2 + $0x558] sm:$0xff]
    %v292 = vld [vmem:[#allocation2 + $0x560] sm:$0xff]
    %v293 = vld [vmem:[#allocation2 + $0x568] sm:$0xff]
    %v294 = vld [vmem:[#allocation2 + $0x570] sm:$0xff]
    %v295 = vld [vmem:[#allocation2 + $0x578] sm:$0xff]
    %v296 = vld [vmem:[#allocation2 + $0x580] sm:$0xff]
    %v297 = vld [vmem:[#allocation2 + $0x588] sm:$0xff]
    %v298 = vld [vmem:[#allocation2 + $0x590] sm:$0xff]
    %v299 = vld [vmem:[#allocation2 + $0x598] sm:$0xff]
    %v300 = vld [vmem:[#allocation2 + $0x5a0] sm:$0xff]
    %v301 = vld [vmem:[#allocation2 + $0x5a8] sm:$0xff]
    %v302 = vld [vmem:[#allocation2 + $0x5b0] sm:$0xff]
    %v303 = vld [vmem:[#allocation2 + $0x5b8] sm:$0xff]
    %v304 = vld [vmem:[#allocation2 + $0x5c0] sm:$0xff]
    %v305 = vld [vmem:[#allocation2 + $0x5c8] sm:$0xff]
    %v306 = vld [vmem:[#allocation2 + $0x5d0] sm:$0xff]
    %v307 = vld [vmem:[#allocation2 + $0x5d8] sm:$0xff]
    %v308 = vld [vmem:[#allocation2 + $0x5e0] sm:$0xff]
    %v309 = vld [vmem:[#allocation2 + $0x5e8] sm:$0xff]
    %v310 = vld [vmem:[#allocation2 + $0x5f0] sm:$0xff]
    %v311 = vld [vmem:[#allocation2 + $0x5f8] sm:$0xff]
    %v312 = vld [vmem:[#allocation2 + $0x600] sm:$0xff]
    %v313 = vld [vmem:[#allocation2 + $0x608] sm:$0xff]
    %v314 = vld [vmem:[#allocation2 + $0x610] sm:$0xff]
    %v315 = vld [vmem:[#allocation2 + $0x618] sm:$0xff]
    %v316 = vld [vmem:[#allocation2 + $0x620] sm:$0xff]
    %v317 = vld [vmem:[#allocation2 + $0x628] sm:$0xff]
    %v318 = vld [vmem:[#allocation2 + $0x630] sm:$0xff]
    %v319 = vld [vmem:[#allocation2 + $0x638] sm:$0xff]
    %v320 = vld [vmem:[#allocation2 + $0x640] sm:$0xff]
    %v321 = vld [vmem:[#allocation2 + $0x648] sm:$0xff]
    %v322 = vld [vmem:[#allocation2 + $0x650] sm:$0xff]
    %v323 = vld [vmem:[#allocation2 + $0x658] sm:$0xff]
    %v324 = vld [vmem:[#allocation2 + $0x660] sm:$0xff]
    %v325 = vld [vmem:[#allocation2 + $0x668] sm:$0xff]
    %v326 = vld [vmem:[#allocation2 + $0x670] sm:$0xff]
    %v327 = vld [vmem:[#allocation2 + $0x678] sm:$0xff]
    %v328 = vld [vmem:[#allocation2 + $0x680] sm:$0xff]
    %v329 = vld [vmem:[#allocation2 + $0x688] sm:$0xff]
    %v330 = vld [vmem:[#allocation2 + $0x690] sm:$0xff]
    %v331 = vld [vmem:[#allocation2 + $0x698] sm:$0xff]
    %v332 = vld [vmem:[#allocation2 + $0x6a0] sm:$0xff]
    %v333 = vld [vmem:[#allocation2 + $0x6a8] sm:$0xff]
    %v334 = vld [vmem:[#allocation2 + $0x6b0] sm:$0xff]
    %v335 = vld [vmem:[#allocation2 + $0x6b8] sm:$0xff]
    %v336 = vld [vmem:[#allocation2 + $0x6c0] sm:$0xff]
    %v337 = vld [vmem:[#allocation2 + $0x6c8] sm:$0xff]
    %v338 = vld [vmem:[#allocation2 + $0x6d0] sm:$0xff]
    %v339 = vld [vmem:[#allocation2 + $0x6d8] sm:$0xff]
    %v340 = vld [vmem:[#allocation2 + $0x6e0] sm:$0xff]
    %v341 = vld [vmem:[#allocation2 + $0x6e8] sm:$0xff]
    %v342 = vld [vmem:[#allocation2 + $0x6f0] sm:$0xff]
    %v343 = vld [vmem:[#allocation2 + $0x6f8] sm:$0xff]
    %v344 = vld [vmem:[#allocation5] sm:$0xf]
    %v346 = vlaneseq
    %v347 = vshrl.u32 %v346, 7
    %v348 = vsub.s32 0, %v347
    %v349 = vrot.slane %v344, %v348
    %v350 = vlaneseq
    %v351 = vshrl.u32 %v350, 7
    %v352 = vsub.s32 1, %v351
    %v353 = vrot.slane %v344, %v352
    %v354 = vlaneseq
    %v355 = vshrl.u32 %v354, 7
    %v356 = vsub.s32 2, %v355
    %v357 = vrot.slane %v344, %v356
    %v358 = vlaneseq
    %v359 = vshrl.u32 %v358, 7
    %v360 = vsub.s32 3, %v359
    %v361 = vrot.slane %v344, %v360
    %v370 = vunpack.c.l.b16 %v116
    %v371 = vunpack.c.h.b16 %v116
    %v372 = vunpack.c.l.b16 %v117
    %v373 = vunpack.c.h.b16 %v117
    %v374 = vunpack.c.l.b16 %v118
    %v375 = vunpack.c.h.b16 %v118
    %v376 = vunpack.c.l.b16 %v119
    %v377 = vpack.c.b16 %v370, %v370
    %v378 = vpack.c.b16 %v371, %v371
    %v379 = vpack.c.b16 %v372, %v372
    %v380 = vpack.c.b16 %v373, %v373
    %v381 = vpack.c.b16 %v374, %v374
    %v382 = vpack.c.b16 %v375, %v375
    %v383 = vpack.c.b16 %v376, %v376
    %v615 = vunpack.c.l.b16 %v120
    %v616 = vunpack.c.h.b16 %v120
    %v617 = vunpack.c.l.b16 %v121
    %v618 = vunpack.c.h.b16 %v121
    %v619 = vunpack.c.l.b16 %v122
    %v620 = vunpack.c.h.b16 %v122
    %v621 = vunpack.c.l.b16 %v123
    %v622 = vunpack.c.h.b16 %v123
    %v623 = vunpack.c.l.b16 %v124
    %v624 = vunpack.c.h.b16 %v124
    %v625 = vunpack.c.l.b16 %v125
    %v626 = vunpack.c.h.b16 %v125
    %v627 = vunpack.c.l.b16 %v126
    %v628 = vunpack.c.h.b16 %v126
    %v629 = vunpack.c.l.b16 %v127
    %v630 = vunpack.c.h.b16 %v127
    %v631 = vunpack.c.l.b16 %v128
    %v632 = vunpack.c.h.b16 %v128
    %v633 = vunpack.c.l.b16 %v129
    %v634 = vunpack.c.h.b16 %v129
    %v635 = vunpack.c.l.b16 %v130
    %v636 = vunpack.c.h.b16 %v130
    %v637 = vunpack.c.l.b16 %v131
    %v638 = vunpack.c.h.b16 %v131
    %v639 = vunpack.c.l.b16 %v132
    %v640 = vunpack.c.h.b16 %v132
    %v641 = vunpack.c.l.b16 %v133
    %v642 = vunpack.c.h.b16 %v133
    %v643 = vunpack.c.l.b16 %v134
    %v644 = vunpack.c.h.b16 %v134
    %v645 = vunpack.c.l.b16 %v135
    %v646 = vunpack.c.h.b16 %v135
    %v647 = vunpack.c.l.b16 %v136
    %v648 = vunpack.c.h.b16 %v136
    %v649 = vunpack.c.l.b16 %v137
    %v650 = vunpack.c.h.b16 %v137
    %v651 = vunpack.c.l.b16 %v138
    %v652 = vunpack.c.h.b16 %v138
    %v653 = vunpack.c.l.b16 %v139
    %v654 = vunpack.c.h.b16 %v139
    %v655 = vunpack.c.l.b16 %v140
    %v656 = vunpack.c.h.b16 %v140
    %v657 = vunpack.c.l.b16 %v141
    %v658 = vunpack.c.h.b16 %v141
    %v659 = vunpack.c.l.b16 %v142
    %v660 = vunpack.c.h.b16 %v142
    %v661 = vunpack.c.l.b16 %v143
    %v662 = vunpack.c.h.b16 %v143
    %v663 = vunpack.c.l.b16 %v144
    %v664 = vunpack.c.h.b16 %v144
    %v665 = vunpack.c.l.b16 %v145
    %v666 = vunpack.c.h.b16 %v145
    %v667 = vunpack.c.l.b16 %v146
    %v668 = vunpack.c.h.b16 %v146
    %v669 = vunpack.c.l.b16 %v147
    %v670 = vunpack.c.h.b16 %v147
    %v671 = vunpack.c.l.b16 %v148
    %v672 = vunpack.c.h.b16 %v148
    %v673 = vunpack.c.l.b16 %v149
    %v674 = vunpack.c.h.b16 %v149
    %v675 = vunpack.c.l.b16 %v150
    %v676 = vunpack.c.h.b16 %v150
    %v677 = vunpack.c.l.b16 %v151
    %v678 = vunpack.c.h.b16 %v151
    %v679 = vunpack.c.l.b16 %v152
    %v680 = vunpack.c.h.b16 %v152
    %v681 = vunpack.c.l.b16 %v153
    %v682 = vunpack.c.h.b16 %v153
    %v683 = vunpack.c.l.b16 %v154
    %v684 = vunpack.c.h.b16 %v154
    %v685 = vunpack.c.l.b16 %v155
    %v686 = vunpack.c.h.b16 %v155
    %v687 = vunpack.c.l.b16 %v156
    %v688 = vunpack.c.h.b16 %v156
    %v689 = vunpack.c.l.b16 %v157
    %v690 = vunpack.c.h.b16 %v157
    %v691 = vunpack.c.l.b16 %v158
    %v692 = vunpack.c.h.b16 %v158
    %v693 = vunpack.c.l.b16 %v159
    %v694 = vunpack.c.h.b16 %v159
    %v695 = vunpack.c.l.b16 %v160
    %v696 = vunpack.c.h.b16 %v160
    %v697 = vunpack.c.l.b16 %v161
    %v698 = vunpack.c.h.b16 %v161
    %v699 = vunpack.c.l.b16 %v162
    %v700 = vunpack.c.h.b16 %v162
    %v701 = vunpack.c.l.b16 %v163
    %v702 = vunpack.c.h.b16 %v163
    %v703 = vunpack.c.l.b16 %v164
    %v704 = vunpack.c.h.b16 %v164
    %v705 = vunpack.c.l.b16 %v165
    %v706 = vunpack.c.h.b16 %v165
    %v707 = vunpack.c.l.b16 %v166
    %v708 = vunpack.c.h.b16 %v166
    %v709 = vunpack.c.l.b16 %v167
    %v710 = vunpack.c.h.b16 %v167
    %v711 = vunpack.c.l.b16 %v168
    %v712 = vunpack.c.h.b16 %v168
    %v713 = vunpack.c.l.b16 %v169
    %v714 = vunpack.c.h.b16 %v169
    %v715 = vunpack.c.l.b16 %v170
    %v716 = vunpack.c.h.b16 %v170
    %v717 = vunpack.c.l.b16 %v171
    %v718 = vunpack.c.h.b16 %v171
    %v719 = vunpack.c.l.b16 %v172
    %v720 = vunpack.c.h.b16 %v172
    %v721 = vunpack.c.l.b16 %v173
    %v722 = vunpack.c.h.b16 %v173
    %v723 = vunpack.c.l.b16 %v174
    %v724 = vunpack.c.h.b16 %v174
    %v725 = vunpack.c.l.b16 %v175
    %v726 = vunpack.c.h.b16 %v175
    %v727 = vunpack.c.l.b16 %v176
    %v728 = vunpack.c.h.b16 %v176
    %v729 = vunpack.c.l.b16 %v177
    %v730 = vunpack.c.h.b16 %v177
    %v731 = vunpack.c.l.b16 %v178
    %v732 = vunpack.c.h.b16 %v178
    %v733 = vunpack.c.l.b16 %v179
    %v734 = vunpack.c.h.b16 %v179
    %v735 = vunpack.c.l.b16 %v180
    %v736 = vunpack.c.h.b16 %v180
    %v737 = vunpack.c.l.b16 %v181
    %v738 = vunpack.c.h.b16 %v181
    %v739 = vunpack.c.l.b16 %v182
    %v740 = vunpack.c.h.b16 %v182
    %v741 = vunpack.c.l.b16 %v183
    %v742 = vunpack.c.h.b16 %v183
    %v743 = vunpack.c.l.b16 %v184
    %v744 = vunpack.c.h.b16 %v184
    %v745 = vunpack.c.l.b16 %v185
    %v746 = vunpack.c.h.b16 %v185
    %v747 = vunpack.c.l.b16 %v186
    %v748 = vunpack.c.h.b16 %v186
    %v749 = vunpack.c.l.b16 %v187
    %v750 = vunpack.c.h.b16 %v187
    %v751 = vunpack.c.l.b16 %v188
    %v752 = vunpack.c.h.b16 %v188
    %v753 = vunpack.c.l.b16 %v189
    %v754 = vunpack.c.h.b16 %v189
    %v755 = vunpack.c.l.b16 %v190
    %v756 = vunpack.c.h.b16 %v190
    %v757 = vunpack.c.l.b16 %v191
    %v758 = vunpack.c.h.b16 %v191
    %v759 = vunpack.c.l.b16 %v192
    %v760 = vunpack.c.h.b16 %v192
    %v761 = vunpack.c.l.b16 %v193
    %v762 = vunpack.c.h.b16 %v193
    %v763 = vunpack.c.l.b16 %v194
    %v764 = vunpack.c.h.b16 %v194
    %v765 = vunpack.c.l.b16 %v195
    %v766 = vunpack.c.h.b16 %v195
    %v767 = vunpack.c.l.b16 %v196
    %v768 = vunpack.c.h.b16 %v196
    %v769 = vunpack.c.l.b16 %v197
    %v770 = vunpack.c.h.b16 %v197
    %v771 = vunpack.c.l.b16 %v198
    %v772 = vunpack.c.h.b16 %v198
    %v773 = vunpack.c.l.b16 %v199
    %v774 = vunpack.c.h.b16 %v199
    %v775 = vunpack.c.l.b16 %v200
    %v776 = vunpack.c.h.b16 %v200
    %v777 = vunpack.c.l.b16 %v201
    %v778 = vunpack.c.h.b16 %v201
    %v779 = vunpack.c.l.b16 %v202
    %v780 = vunpack.c.h.b16 %v202
    %v781 = vunpack.c.l.b16 %v203
    %v782 = vunpack.c.h.b16 %v203
    %v783 = vunpack.c.l.b16 %v204
    %v784 = vunpack.c.h.b16 %v204
    %v785 = vunpack.c.l.b16 %v205
    %v786 = vunpack.c.h.b16 %v205
    %v787 = vunpack.c.l.b16 %v206
    %v788 = vunpack.c.h.b16 %v206
    %v789 = vunpack.c.l.b16 %v207
    %v790 = vunpack.c.h.b16 %v207
    %v791 = vunpack.c.l.b16 %v208
    %v792 = vunpack.c.h.b16 %v208
    %v793 = vunpack.c.l.b16 %v209
    %v794 = vunpack.c.h.b16 %v209
    %v795 = vunpack.c.l.b16 %v210
    %v796 = vunpack.c.h.b16 %v210
    %v797 = vunpack.c.l.b16 %v211
    %v798 = vunpack.c.h.b16 %v211
    %v799 = vunpack.c.l.b16 %v212
    %v800 = vunpack.c.h.b16 %v212
    %v801 = vunpack.c.l.b16 %v213
    %v802 = vunpack.c.h.b16 %v213
    %v803 = vunpack.c.l.b16 %v214
    %v804 = vunpack.c.h.b16 %v214
    %v805 = vunpack.c.l.b16 %v215
    %v806 = vunpack.c.h.b16 %v215
    %v807 = vunpack.c.l.b16 %v216
    %v808 = vunpack.c.h.b16 %v216
    %v809 = vunpack.c.l.b16 %v217
    %v810 = vunpack.c.h.b16 %v217
    %v811 = vunpack.c.l.b16 %v218
    %v812 = vunpack.c.h.b16 %v218
    %v813 = vunpack.c.l.b16 %v219
    %v814 = vunpack.c.h.b16 %v219
    %v815 = vunpack.c.l.b16 %v220
    %v816 = vunpack.c.h.b16 %v220
    %v817 = vunpack.c.l.b16 %v221
    %v818 = vunpack.c.h.b16 %v221
    %v819 = vunpack.c.l.b16 %v222
    %v820 = vunpack.c.h.b16 %v222
    %v821 = vunpack.c.l.b16 %v223
    %v822 = vunpack.c.h.b16 %v223
    %v823 = vunpack.c.l.b16 %v224
    %v824 = vunpack.c.h.b16 %v224
    %v825 = vunpack.c.l.b16 %v225
    %v826 = vunpack.c.h.b16 %v225
    %v827 = vunpack.c.l.b16 %v226
    %v828 = vunpack.c.h.b16 %v226
    %v829 = vunpack.c.l.b16 %v227
    %v830 = vunpack.c.h.b16 %v227
    %v831 = vunpack.c.l.b16 %v228
    %v832 = vunpack.c.h.b16 %v228
    %v833 = vunpack.c.l.b16 %v229
    %v834 = vunpack.c.h.b16 %v229
    %v835 = vunpack.c.l.b16 %v230
    %v836 = vunpack.c.h.b16 %v230
    %v837 = vunpack.c.l.b16 %v231
    %v838 = vunpack.c.h.b16 %v231
    %v839 = vunpack.c.l.b16 %v232
    %v840 = vunpack.c.h.b16 %v232
    %v841 = vunpack.c.l.b16 %v233
    %v842 = vunpack.c.h.b16 %v233
    %v843 = vunpack.c.l.b16 %v234
    %v844 = vunpack.c.h.b16 %v234
    %v845 = vunpack.c.l.b16 %v235
    %v846 = vunpack.c.h.b16 %v235
    %v847 = vunpack.c.l.b16 %v236
    %v848 = vunpack.c.h.b16 %v236
    %v849 = vunpack.c.l.b16 %v237
    %v850 = vunpack.c.h.b16 %v237
    %v851 = vunpack.c.l.b16 %v238
    %v852 = vunpack.c.h.b16 %v238
    %v853 = vunpack.c.l.b16 %v239
    %v854 = vunpack.c.h.b16 %v239
    %v855 = vunpack.c.l.b16 %v240
    %v856 = vunpack.c.h.b16 %v240
    %v857 = vunpack.c.l.b16 %v241
    %v858 = vunpack.c.h.b16 %v241
    %v859 = vunpack.c.l.b16 %v242
    %v860 = vunpack.c.h.b16 %v242
    %v861 = vunpack.c.l.b16 %v243
    %v862 = vunpack.c.h.b16 %v243
    %v863 = vunpack.c.l.b16 %v244
    %v864 = vunpack.c.h.b16 %v244
    %v865 = vunpack.c.l.b16 %v245
    %v866 = vunpack.c.h.b16 %v245
    %v867 = vunpack.c.l.b16 %v246
    %v868 = vunpack.c.h.b16 %v246
    %v869 = vunpack.c.l.b16 %v247
    %v870 = vunpack.c.h.b16 %v247
    %v871 = vunpack.c.l.b16 %v248
    %v872 = vunpack.c.h.b16 %v248
    %v873 = vunpack.c.l.b16 %v249
    %v874 = vunpack.c.h.b16 %v249
    %v875 = vunpack.c.l.b16 %v250
    %v876 = vunpack.c.h.b16 %v250
    %v877 = vunpack.c.l.b16 %v251
    %v878 = vunpack.c.h.b16 %v251
    %v879 = vunpack.c.l.b16 %v252
    %v880 = vunpack.c.h.b16 %v252
    %v881 = vunpack.c.l.b16 %v253
    %v882 = vunpack.c.h.b16 %v253
    %v883 = vunpack.c.l.b16 %v254
    %v884 = vunpack.c.h.b16 %v254
    %v885 = vunpack.c.l.b16 %v255
    %v886 = vunpack.c.h.b16 %v255
    %v887 = vunpack.c.l.b16 %v256
    %v888 = vunpack.c.h.b16 %v256
    %v889 = vunpack.c.l.b16 %v257
    %v890 = vunpack.c.h.b16 %v257
    %v891 = vunpack.c.l.b16 %v258
    %v892 = vunpack.c.h.b16 %v258
    %v893 = vunpack.c.l.b16 %v259
    %v894 = vunpack.c.h.b16 %v259
    %v895 = vunpack.c.l.b16 %v260
    %v896 = vunpack.c.h.b16 %v260
    %v897 = vunpack.c.l.b16 %v261
    %v898 = vunpack.c.h.b16 %v261
    %v899 = vunpack.c.l.b16 %v262
    %v900 = vunpack.c.h.b16 %v262
    %v901 = vunpack.c.l.b16 %v263
    %v902 = vunpack.c.h.b16 %v263
    %v903 = vunpack.c.l.b16 %v264
    %v904 = vunpack.c.h.b16 %v264
    %v905 = vunpack.c.l.b16 %v265
    %v906 = vunpack.c.h.b16 %v265
    %v907 = vunpack.c.l.b16 %v266
    %v908 = vunpack.c.h.b16 %v266
    %v909 = vunpack.c.l.b16 %v267
    %v910 = vunpack.c.h.b16 %v267
    %v911 = vunpack.c.l.b16 %v268
    %v912 = vunpack.c.h.b16 %v268
    %v913 = vunpack.c.l.b16 %v269
    %v914 = vunpack.c.h.b16 %v269
    %v915 = vunpack.c.l.b16 %v270
    %v916 = vunpack.c.h.b16 %v270
    %v917 = vunpack.c.l.b16 %v271
    %v918 = vunpack.c.h.b16 %v271
    %v919 = vunpack.c.l.b16 %v272
    %v920 = vunpack.c.h.b16 %v272
    %v921 = vunpack.c.l.b16 %v273
    %v922 = vunpack.c.h.b16 %v273
    %v923 = vunpack.c.l.b16 %v274
    %v924 = vunpack.c.h.b16 %v274
    %v925 = vunpack.c.l.b16 %v275
    %v926 = vunpack.c.h.b16 %v275
    %v927 = vunpack.c.l.b16 %v276
    %v928 = vunpack.c.h.b16 %v276
    %v929 = vunpack.c.l.b16 %v277
    %v930 = vunpack.c.h.b16 %v277
    %v931 = vunpack.c.l.b16 %v278
    %v932 = vunpack.c.h.b16 %v278
    %v933 = vunpack.c.l.b16 %v279
    %v934 = vunpack.c.h.b16 %v279
    %v935 = vunpack.c.l.b16 %v280
    %v936 = vunpack.c.h.b16 %v280
    %v937 = vunpack.c.l.b16 %v281
    %v938 = vunpack.c.h.b16 %v281
    %v939 = vunpack.c.l.b16 %v282
    %v940 = vunpack.c.h.b16 %v282
    %v941 = vunpack.c.l.b16 %v283
    %v942 = vunpack.c.h.b16 %v283
    %v943 = vunpack.c.l.b16 %v284
    %v944 = vunpack.c.h.b16 %v284
    %v945 = vunpack.c.l.b16 %v285
    %v946 = vunpack.c.h.b16 %v285
    %v947 = vunpack.c.l.b16 %v286
    %v948 = vunpack.c.h.b16 %v286
    %v949 = vunpack.c.l.b16 %v287
    %v950 = vunpack.c.h.b16 %v287
    %v951 = vunpack.c.l.b16 %v288
    %v952 = vunpack.c.h.b16 %v288
    %v953 = vunpack.c.l.b16 %v289
    %v954 = vunpack.c.h.b16 %v289
    %v955 = vunpack.c.l.b16 %v290
    %v956 = vunpack.c.h.b16 %v290
    %v957 = vunpack.c.l.b16 %v291
    %v958 = vunpack.c.h.b16 %v291
    %v959 = vunpack.c.l.b16 %v292
    %v960 = vunpack.c.h.b16 %v292
    %v961 = vunpack.c.l.b16 %v293
    %v962 = vunpack.c.h.b16 %v293
    %v963 = vunpack.c.l.b16 %v294
    %v964 = vunpack.c.h.b16 %v294
    %v965 = vunpack.c.l.b16 %v295
    %v966 = vunpack.c.h.b16 %v295
    %v967 = vunpack.c.l.b16 %v296
    %v968 = vunpack.c.h.b16 %v296
    %v969 = vunpack.c.l.b16 %v297
    %v970 = vunpack.c.h.b16 %v297
    %v971 = vunpack.c.l.b16 %v298
    %v972 = vunpack.c.h.b16 %v298
    %v973 = vunpack.c.l.b16 %v299
    %v974 = vunpack.c.h.b16 %v299
    %v975 = vunpack.c.l.b16 %v300
    %v976 = vunpack.c.h.b16 %v300
    %v977 = vunpack.c.l.b16 %v301
    %v978 = vunpack.c.h.b16 %v301
    %v979 = vunpack.c.l.b16 %v302
    %v980 = vunpack.c.h.b16 %v302
    %v981 = vunpack.c.l.b16 %v303
    %v982 = vunpack.c.h.b16 %v303
    %v983 = vunpack.c.l.b16 %v304
    %v984 = vunpack.c.h.b16 %v304
    %v985 = vunpack.c.l.b16 %v305
    %v986 = vunpack.c.h.b16 %v305
    %v987 = vunpack.c.l.b16 %v306
    %v988 = vunpack.c.h.b16 %v306
    %v989 = vunpack.c.l.b16 %v307
    %v990 = vunpack.c.h.b16 %v307
    %v991 = vunpack.c.l.b16 %v308
    %v992 = vunpack.c.h.b16 %v308
    %v993 = vunpack.c.l.b16 %v309
    %v994 = vunpack.c.h.b16 %v309
    %v995 = vunpack.c.l.b16 %v310
    %v996 = vunpack.c.h.b16 %v310
    %v997 = vunpack.c.l.b16 %v311
    %v998 = vunpack.c.h.b16 %v311
    %v999 = vunpack.c.l.b16 %v312
    %v1000 = vunpack.c.h.b16 %v312
    %v1001 = vunpack.c.l.b16 %v313
    %v1002 = vunpack.c.h.b16 %v313
    %v1003 = vunpack.c.l.b16 %v314
    %v1004 = vunpack.c.h.b16 %v314
    %v1005 = vunpack.c.l.b16 %v315
    %v1006 = vunpack.c.h.b16 %v315
    %v1007 = vunpack.c.l.b16 %v316
    %v1008 = vunpack.c.h.b16 %v316
    %v1009 = vunpack.c.l.b16 %v317
    %v1010 = vunpack.c.h.b16 %v317
    %v1011 = vunpack.c.l.b16 %v318
    %v1012 = vunpack.c.h.b16 %v318
    %v1013 = vunpack.c.l.b16 %v319
    %v1014 = vunpack.c.h.b16 %v319
    %v1015 = vunpack.c.l.b16 %v320
    %v1016 = vunpack.c.h.b16 %v320
    %v1017 = vunpack.c.l.b16 %v321
    %v1018 = vunpack.c.h.b16 %v321
    %v1019 = vunpack.c.l.b16 %v322
    %v1020 = vunpack.c.h.b16 %v322
    %v1021 = vunpack.c.l.b16 %v323
    %v1022 = vunpack.c.h.b16 %v323
    %v1023 = vunpack.c.l.b16 %v324
    %v1024 = vunpack.c.h.b16 %v324
    %v1025 = vunpack.c.l.b16 %v325
    %v1026 = vunpack.c.h.b16 %v325
    %v1027 = vunpack.c.l.b16 %v326
    %v1028 = vunpack.c.h.b16 %v326
    %v1029 = vunpack.c.l.b16 %v327
    %v1030 = vunpack.c.h.b16 %v327
    %v1031 = vunpack.c.l.b16 %v328
    %v1032 = vunpack.c.h.b16 %v328
    %v1033 = vunpack.c.l.b16 %v329
    %v1034 = vunpack.c.h.b16 %v329
    %v1035 = vunpack.c.l.b16 %v330
    %v1036 = vunpack.c.h.b16 %v330
    %v1037 = vunpack.c.l.b16 %v331
    %v1038 = vunpack.c.h.b16 %v331
    %v1039 = vunpack.c.l.b16 %v332
    %v1040 = vunpack.c.h.b16 %v332
    %v1041 = vunpack.c.l.b16 %v333
    %v1042 = vunpack.c.h.b16 %v333
    %v1043 = vunpack.c.l.b16 %v334
    %v1044 = vunpack.c.h.b16 %v334
    %v1045 = vunpack.c.l.b16 %v335
    %v1046 = vunpack.c.h.b16 %v335
    %v1047 = vunpack.c.l.b16 %v336
    %v1048 = vunpack.c.h.b16 %v336
    %v1049 = vunpack.c.l.b16 %v337
    %v1050 = vunpack.c.h.b16 %v337
    %v1051 = vunpack.c.l.b16 %v338
    %v1052 = vunpack.c.h.b16 %v338
    %v1053 = vunpack.c.l.b16 %v339
    %v1054 = vunpack.c.h.b16 %v339
    %v1055 = vunpack.c.l.b16 %v340
    %v1056 = vunpack.c.h.b16 %v340
    %v1057 = vunpack.c.l.b16 %v341
    %v1058 = vunpack.c.h.b16 %v341
    %v1059 = vunpack.c.l.b16 %v342
    %v1060 = vunpack.c.h.b16 %v342
    %v1061 = vunpack.c.l.b16 %v343
    %v1062 = vunpack.c.h.b16 %v343
    %v1063 = vpack.c.b16 %v619, %v615
    %v1064 = vpack.c.b16 %v620, %v616
    %v1065 = vpack.c.b16 %v621, %v617
    %v1066 = vpack.c.b16 %v622, %v618
    %v1067 = vpack.c.b16 %v627, %v623
    %v1068 = vpack.c.b16 %v628, %v624
    %v1069 = vpack.c.b16 %v629, %v625
    %v1070 = vpack.c.b16 %v630, %v626
    %v1071 = vpack.c.b16 %v635, %v631
    %v1072 = vpack.c.b16 %v636, %v632
    %v1073 = vpack.c.b16 %v637, %v633
    %v1074 = vpack.c.b16 %v638, %v634
    %v1075 = vpack.c.b16 %v643, %v639
    %v1076 = vpack.c.b16 %v644, %v640
    %v1077 = vpack.c.b16 %v645, %v641
    %v1078 = vpack.c.b16 %v646, %v642
    %v1079 = vpack.c.b16 %v651, %v647
    %v1080 = vpack.c.b16 %v652, %v648
    %v1081 = vpack.c.b16 %v653, %v649
    %v1082 = vpack.c.b16 %v654, %v650
    %v1083 = vpack.c.b16 %v659, %v655
    %v1084 = vpack.c.b16 %v660, %v656
    %v1085 = vpack.c.b16 %v661, %v657
    %v1086 = vpack.c.b16 %v662, %v658
    %v1087 = vpack.c.b16 %v667, %v663
    %v1088 = vpack.c.b16 %v668, %v664
    %v1089 = vpack.c.b16 %v669, %v665
    %v1090 = vpack.c.b16 %v670, %v666
    %v1091 = vpack.c.b16 %v675, %v671
    %v1092 = vpack.c.b16 %v676, %v672
    %v1093 = vpack.c.b16 %v677, %v673
    %v1094 = vpack.c.b16 %v678, %v674
    %v1095 = vpack.c.b16 %v683, %v679
    %v1096 = vpack.c.b16 %v684, %v680
    %v1097 = vpack.c.b16 %v685, %v681
    %v1098 = vpack.c.b16 %v686, %v682
    %v1099 = vpack.c.b16 %v691, %v687
    %v1100 = vpack.c.b16 %v692, %v688
    %v1101 = vpack.c.b16 %v693, %v689
    %v1102 = vpack.c.b16 %v694, %v690
    %v1103 = vpack.c.b16 %v699, %v695
    %v1104 = vpack.c.b16 %v700, %v696
    %v1105 = vpack.c.b16 %v701, %v697
    %v1106 = vpack.c.b16 %v702, %v698
    %v1107 = vpack.c.b16 %v707, %v703
    %v1108 = vpack.c.b16 %v708, %v704
    %v1109 = vpack.c.b16 %v709, %v705
    %v1110 = vpack.c.b16 %v710, %v706
    %v1111 = vpack.c.b16 %v715, %v711
    %v1112 = vpack.c.b16 %v716, %v712
    %v1113 = vpack.c.b16 %v717, %v713
    %v1114 = vpack.c.b16 %v718, %v714
    %v1115 = vpack.c.b16 %v723, %v719
    %v1116 = vpack.c.b16 %v724, %v720
    %v1117 = vpack.c.b16 %v725, %v721
    %v1118 = vpack.c.b16 %v726, %v722
    %v1119 = vpack.c.b16 %v731, %v727
    %v1120 = vpack.c.b16 %v732, %v728
    %v1121 = vpack.c.b16 %v733, %v729
    %v1122 = vpack.c.b16 %v734, %v730
    %v1123 = vpack.c.b16 %v739, %v735
    %v1124 = vpack.c.b16 %v740, %v736
    %v1125 = vpack.c.b16 %v741, %v737
    %v1126 = vpack.c.b16 %v742, %v738
    %v1127 = vpack.c.b16 %v747, %v743
    %v1128 = vpack.c.b16 %v748, %v744
    %v1129 = vpack.c.b16 %v749, %v745
    %v1130 = vpack.c.b16 %v750, %v746
    %v1131 = vpack.c.b16 %v755, %v751
    %v1132 = vpack.c.b16 %v756, %v752
    %v1133 = vpack.c.b16 %v757, %v753
    %v1134 = vpack.c.b16 %v758, %v754
    %v1135 = vpack.c.b16 %v763, %v759
    %v1136 = vpack.c.b16 %v764, %v760
    %v1137 = vpack.c.b16 %v765, %v761
    %v1138 = vpack.c.b16 %v766, %v762
    %v1139 = vpack.c.b16 %v771, %v767
    %v1140 = vpack.c.b16 %v772, %v768
    %v1141 = vpack.c.b16 %v773, %v769
    %v1142 = vpack.c.b16 %v774, %v770
    %v1143 = vpack.c.b16 %v779, %v775
    %v1144 = vpack.c.b16 %v780, %v776
    %v1145 = vpack.c.b16 %v781, %v777
    %v1146 = vpack.c.b16 %v782, %v778
    %v1147 = vpack.c.b16 %v787, %v783
    %v1148 = vpack.c.b16 %v788, %v784
    %v1149 = vpack.c.b16 %v789, %v785
    %v1150 = vpack.c.b16 %v790, %v786
    %v1151 = vpack.c.b16 %v795, %v791
    %v1152 = vpack.c.b16 %v796, %v792
    %v1153 = vpack.c.b16 %v797, %v793
    %v1154 = vpack.c.b16 %v798, %v794
    %v1155 = vpack.c.b16 %v803, %v799
    %v1156 = vpack.c.b16 %v804, %v800
    %v1157 = vpack.c.b16 %v805, %v801
    %v1158 = vpack.c.b16 %v806, %v802
    %v1159 = vpack.c.b16 %v811, %v807
    %v1160 = vpack.c.b16 %v812, %v808
    %v1161 = vpack.c.b16 %v813, %v809
    %v1162 = vpack.c.b16 %v814, %v810
    %v1163 = vpack.c.b16 %v819, %v815
    %v1164 = vpack.c.b16 %v820, %v816
    %v1165 = vpack.c.b16 %v821, %v817
    %v1166 = vpack.c.b16 %v822, %v818
    %v1167 = vpack.c.b16 %v827, %v823
    %v1168 = vpack.c.b16 %v828, %v824
    %v1169 = vpack.c.b16 %v829, %v825
    %v1170 = vpack.c.b16 %v830, %v826
    %v1171 = vpack.c.b16 %v835, %v831
    %v1172 = vpack.c.b16 %v836, %v832
    %v1173 = vpack.c.b16 %v837, %v833
    %v1174 = vpack.c.b16 %v838, %v834
    %v1175 = vpack.c.b16 %v843, %v839
    %v1176 = vpack.c.b16 %v844, %v840
    %v1177 = vpack.c.b16 %v845, %v841
    %v1178 = vpack.c.b16 %v846, %v842
    %v1179 = vpack.c.b16 %v851, %v847
    %v1180 = vpack.c.b16 %v852, %v848
    %v1181 = vpack.c.b16 %v853, %v849
    %v1182 = vpack.c.b16 %v854, %v850
    %v1183 = vpack.c.b16 %v859, %v855
    %v1184 = vpack.c.b16 %v860, %v856
    %v1185 = vpack.c.b16 %v861, %v857
    %v1186 = vpack.c.b16 %v862, %v858
    %v1187 = vpack.c.b16 %v867, %v863
    %v1188 = vpack.c.b16 %v868, %v864
    %v1189 = vpack.c.b16 %v869, %v865
    %v1190 = vpack.c.b16 %v870, %v866
    %v1191 = vpack.c.b16 %v875, %v871
    %v1192 = vpack.c.b16 %v876, %v872
    %v1193 = vpack.c.b16 %v877, %v873
    %v1194 = vpack.c.b16 %v878, %v874
    %v1195 = vpack.c.b16 %v883, %v879
    %v1196 = vpack.c.b16 %v884, %v880
    %v1197 = vpack.c.b16 %v885, %v881
    %v1198 = vpack.c.b16 %v886, %v882
    %v1199 = vpack.c.b16 %v891, %v887
    %v1200 = vpack.c.b16 %v892, %v888
    %v1201 = vpack.c.b16 %v893, %v889
    %v1202 = vpack.c.b16 %v894, %v890
    %v1203 = vpack.c.b16 %v899, %v895
    %v1204 = vpack.c.b16 %v900, %v896
    %v1205 = vpack.c.b16 %v901, %v897
    %v1206 = vpack.c.b16 %v902, %v898
    %v1207 = vpack.c.b16 %v907, %v903
    %v1208 = vpack.c.b16 %v908, %v904
    %v1209 = vpack.c.b16 %v909, %v905
    %v1210 = vpack.c.b16 %v910, %v906
    %v1211 = vpack.c.b16 %v915, %v911
    %v1212 = vpack.c.b16 %v916, %v912
    %v1213 = vpack.c.b16 %v917, %v913
    %v1214 = vpack.c.b16 %v918, %v914
    %v1215 = vpack.c.b16 %v923, %v919
    %v1216 = vpack.c.b16 %v924, %v920
    %v1217 = vpack.c.b16 %v925, %v921
    %v1218 = vpack.c.b16 %v926, %v922
    %v1219 = vpack.c.b16 %v931, %v927
    %v1220 = vpack.c.b16 %v932, %v928
    %v1221 = vpack.c.b16 %v933, %v929
    %v1222 = vpack.c.b16 %v934, %v930
    %v1223 = vpack.c.b16 %v939, %v935
    %v1224 = vpack.c.b16 %v940, %v936
    %v1225 = vpack.c.b16 %v941, %v937
    %v1226 = vpack.c.b16 %v942, %v938
    %v1227 = vpack.c.b16 %v947, %v943
    %v1228 = vpack.c.b16 %v948, %v944
    %v1229 = vpack.c.b16 %v949, %v945
    %v1230 = vpack.c.b16 %v950, %v946
    %v1231 = vpack.c.b16 %v955, %v951
    %v1232 = vpack.c.b16 %v956, %v952
    %v1233 = vpack.c.b16 %v957, %v953
    %v1234 = vpack.c.b16 %v958, %v954
    %v1235 = vpack.c.b16 %v963, %v959
    %v1236 = vpack.c.b16 %v964, %v960
    %v1237 = vpack.c.b16 %v965, %v961
    %v1238 = vpack.c.b16 %v966, %v962
    %v1239 = vpack.c.b16 %v971, %v967
    %v1240 = vpack.c.b16 %v972, %v968
    %v1241 = vpack.c.b16 %v973, %v969
    %v1242 = vpack.c.b16 %v974, %v970
    %v1243 = vpack.c.b16 %v979, %v975
    %v1244 = vpack.c.b16 %v980, %v976
    %v1245 = vpack.c.b16 %v981, %v977
    %v1246 = vpack.c.b16 %v982, %v978
    %v1247 = vpack.c.b16 %v987, %v983
    %v1248 = vpack.c.b16 %v988, %v984
    %v1249 = vpack.c.b16 %v989, %v985
    %v1250 = vpack.c.b16 %v990, %v986
    %v1251 = vpack.c.b16 %v995, %v991
    %v1252 = vpack.c.b16 %v996, %v992
    %v1253 = vpack.c.b16 %v997, %v993
    %v1254 = vpack.c.b16 %v998, %v994
    %v1255 = vpack.c.b16 %v1003, %v999
    %v1256 = vpack.c.b16 %v1004, %v1000
    %v1257 = vpack.c.b16 %v1005, %v1001
    %v1258 = vpack.c.b16 %v1006, %v1002
    %v1259 = vpack.c.b16 %v1011, %v1007
    %v1260 = vpack.c.b16 %v1012, %v1008
    %v1261 = vpack.c.b16 %v1013, %v1009
    %v1262 = vpack.c.b16 %v1014, %v1010
    %v1263 = vpack.c.b16 %v1019, %v1015
    %v1264 = vpack.c.b16 %v1020, %v1016
    %v1265 = vpack.c.b16 %v1021, %v1017
    %v1266 = vpack.c.b16 %v1022, %v1018
    %v1267 = vpack.c.b16 %v1027, %v1023
    %v1268 = vpack.c.b16 %v1028, %v1024
    %v1269 = vpack.c.b16 %v1029, %v1025
    %v1270 = vpack.c.b16 %v1030, %v1026
    %v1271 = vpack.c.b16 %v1035, %v1031
    %v1272 = vpack.c.b16 %v1036, %v1032
    %v1273 = vpack.c.b16 %v1037, %v1033
    %v1274 = vpack.c.b16 %v1038, %v1034
    %v1275 = vpack.c.b16 %v1043, %v1039
    %v1276 = vpack.c.b16 %v1044, %v1040
    %v1277 = vpack.c.b16 %v1045, %v1041
    %v1278 = vpack.c.b16 %v1046, %v1042
    %v1279 = vpack.c.b16 %v1051, %v1047
    %v1280 = vpack.c.b16 %v1052, %v1048
    %v1281 = vpack.c.b16 %v1053, %v1049
    %v1282 = vpack.c.b16 %v1054, %v1050
    %v1283 = vpack.c.b16 %v1059, %v1055
    %v1284 = vpack.c.b16 %v1060, %v1056
    %v1285 = vpack.c.b16 %v1061, %v1057
    %v1286 = vpack.c.b16 %v1062, %v1058
    %1511 = vmatprep.subr.bf16.mxu0 %v1092
    %1512 = vmatpush1.bf16.msra.mxu0 %v1091
    %1513 = vmatprep.subr.bf16.mxu0 %v1088
    %1514 = vmatpush1.bf16.msra.mxu0 %v1087
    %1515 = vmatprep.subr.bf16.mxu0 %v1084
    %1516 = vmatpush1.bf16.msra.mxu0 %v1083
    %1517 = vmatprep.subr.bf16.mxu0 %v1080
    %1518 = vmatpush1.bf16.msra.mxu0 %v1079
    %1519 = vmatprep.subr.bf16.mxu0 %v1076
    %1520 = vmatpush1.bf16.msra.mxu0 %v1075
    %1521 = vmatprep.subr.bf16.mxu0 %v1072
    %1522 = vmatpush1.bf16.msra.mxu0 %v1071
    %1523 = vmatprep.subr.bf16.mxu0 %v1068
    %1524 = vmatpush1.bf16.msra.mxu0 %v1067
    %1525 = vmatprep.subr.bf16.mxu0 %v1064
    %1526 = vmatpush1.bf16.msra.mxu0 %v1063
    %1527 = vmatprep.subr.bf16.mxu0 %v1124
    %1528 = vmatpush2.bf16.msra.mxu0 %v1123
    %1529 = vmatprep.subr.bf16.mxu0 %v1120
    %1530 = vmatpush2.bf16.msra.mxu0 %v1119
    %1531 = vmatprep.subr.bf16.mxu0 %v1116
    %1532 = vmatpush2.bf16.msra.mxu0 %v1115
    %1533 = vmatprep.subr.bf16.mxu0 %v1112
    %1534 = vmatpush2.bf16.msra.mxu0 %v1111
    %1535 = vmatprep.subr.bf16.mxu0 %v1108
    %1536 = vmatpush2.bf16.msra.mxu0 %v1107
    %1537 = vmatprep.subr.bf16.mxu0 %v1104
    %1538 = vmatpush2.bf16.msra.mxu0 %v1103
    %1539 = vmatprep.subr.bf16.mxu0 %v1100
    %1540 = vmatpush2.bf16.msra.mxu0 %v1099
    %1541 = vmatprep.subr.bf16.mxu0 %v1096
    %1542 = vmatpush2.bf16.msra.mxu0 %v1095
    %1543 = vmatprep.mubr.bf16.mxu0 %v378
    %1544 = vmatmul.mubr.bf16.gmra.mxu0 %v377
    %v1545 = vpop.f32.mrf.mxu0
    %v1546 = vadd.f32 %v349, %v1545
    %v1547 = vpop.f32.mrf.mxu0
    %v1548 = vadd.f32 %v353, %v1547
    %v1549 = vpop.f32.mrf.mxu0
    %v1550 = vpop.f32.mrf.mxu0
    %1551 = vdwg.mxu0
    %1552 = vmatprep.subr.bf16.mxu0 %v1156
    %1553 = vmatpush1.bf16.msra.mxu0 %v1155
    %1554 = vmatprep.subr.bf16.mxu0 %v1152
    %1555 = vmatpush1.bf16.msra.mxu0 %v1151
    %1556 = vmatprep.subr.bf16.mxu0 %v1148
    %1557 = vmatpush1.bf16.msra.mxu0 %v1147
    %1558 = vmatprep.subr.bf16.mxu0 %v1144
    %1559 = vmatpush1.bf16.msra.mxu0 %v1143
    %1560 = vmatprep.subr.bf16.mxu0 %v1140
    %1561 = vmatpush1.bf16.msra.mxu0 %v1139
    %1562 = vmatprep.subr.bf16.mxu0 %v1136
    %1563 = vmatpush1.bf16.msra.mxu0 %v1135
    %1564 = vmatprep.subr.bf16.mxu0 %v1132
    %1565 = vmatpush1.bf16.msra.mxu0 %v1131
    %1566 = vmatprep.subr.bf16.mxu0 %v1128
    %1567 = vmatpush1.bf16.msra.mxu0 %v1127
    %1568 = vmatprep.subr.bf16.mxu0 %v1188
    %1569 = vmatpush2.bf16.msra.mxu0 %v1187
    %1570 = vmatprep.subr.bf16.mxu0 %v1184
    %1571 = vmatpush2.bf16.msra.mxu0 %v1183
    %1572 = vmatprep.subr.bf16.mxu0 %v1180
    %1573 = vmatpush2.bf16.msra.mxu0 %v1179
    %1574 = vmatprep.subr.bf16.mxu0 %v1176
    %1575 = vmatpush2.bf16.msra.mxu0 %v1175
    %1576 = vmatprep.subr.bf16.mxu0 %v1172
    %1577 = vmatpush2.bf16.msra.mxu0 %v1171
    %1578 = vmatprep.subr.bf16.mxu0 %v1168
    %1579 = vmatpush2.bf16.msra.mxu0 %v1167
    %1580 = vmatprep.subr.bf16.mxu0 %v1164
    %1581 = vmatpush2.bf16.msra.mxu0 %v1163
    %1582 = vmatprep.subr.bf16.mxu0 %v1160
    %1583 = vmatpush2.bf16.msra.mxu0 %v1159
    %1584 = vmatprep.mubr.bf16.mxu0 %v380
    %1585 = vmatmul.mubr.bf16.gmra.mxu0 %v379
    %v1586 = vpop.f32.mrf.mxu0
    %v1587 = vadd.f32 %v1546, %v1586
    %v1588 = vpop.f32.mrf.mxu0
    %v1589 = vadd.f32 %v1548, %v1588
    %v1590 = vpop.f32.mrf.mxu0
    %v1591 = vpop.f32.mrf.mxu0
    %1592 = vdwg.mxu0
    %1593 = vmatprep.subr.bf16.mxu0 %v1220
    %1594 = vmatpush1.bf16.msra.mxu0 %v1219
    %1595 = vmatprep.subr.bf16.mxu0 %v1216
    %1596 = vmatpush1.bf16.msra.mxu0 %v1215
    %1597 = vmatprep.subr.bf16.mxu0 %v1212
    %1598 = vmatpush1.bf16.msra.mxu0 %v1211
    %1599 = vmatprep.subr.bf16.mxu0 %v1208
    %1600 = vmatpush1.bf16.msra.mxu0 %v1207
    %1601 = vmatprep.subr.bf16.mxu0 %v1204
    %1602 = vmatpush1.bf16.msra.mxu0 %v1203
    %1603 = vmatprep.subr.bf16.mxu0 %v1200
    %1604 = vmatpush1.bf16.msra.mxu0 %v1199
    %1605 = vmatprep.subr.bf16.mxu0 %v1196
    %1606 = vmatpush1.bf16.msra.mxu0 %v1195
    %1607 = vmatprep.subr.bf16.mxu0 %v1192
    %1608 = vmatpush1.bf16.msra.mxu0 %v1191
    %1609 = vmatprep.subr.bf16.mxu0 %v1252
    %1610 = vmatpush2.bf16.msra.mxu0 %v1251
    %1611 = vmatprep.subr.bf16.mxu0 %v1248
    %1612 = vmatpush2.bf16.msra.mxu0 %v1247
    %1613 = vmatprep.subr.bf16.mxu0 %v1244
    %1614 = vmatpush2.bf16.msra.mxu0 %v1243
    %1615 = vmatprep.subr.bf16.mxu0 %v1240
    %1616 = vmatpush2.bf16.msra.mxu0 %v1239
    %1617 = vmatprep.subr.bf16.mxu0 %v1236
    %1618 = vmatpush2.bf16.msra.mxu0 %v1235
    %1619 = vmatprep.subr.bf16.mxu0 %v1232
    %1620 = vmatpush2.bf16.msra.mxu0 %v1231
    %1621 = vmatprep.subr.bf16.mxu0 %v1228
    %1622 = vmatpush2.bf16.msra.mxu0 %v1227
    %1623 = vmatprep.subr.bf16.mxu0 %v1224
    %1624 = vmatpush2.bf16.msra.mxu0 %v1223
    %1625 = vmatprep.mubr.bf16.mxu0 %v382
    %1626 = vmatmul.mubr.bf16.gmra.mxu0 %v381
    %v1627 = vpop.f32.mrf.mxu0
    %v1628 = vadd.f32 %v1587, %v1627
    %v1629 = vpop.f32.mrf.mxu0
    %v1630 = vadd.f32 %v1589, %v1629
    %v1631 = vpop.f32.mrf.mxu0
    %v1632 = vpop.f32.mrf.mxu0
    %1633 = vdwg.mxu0
    %1634 = vmatprep.subr.bf16.mxu0 %v1284
    %1635 = vmatpush1.bf16.msra.mxu0 %v1283
    %1636 = vmatprep.subr.bf16.mxu0 %v1280
    %1637 = vmatpush1.bf16.msra.mxu0 %v1279
    %1638 = vmatprep.subr.bf16.mxu0 %v1276
    %1639 = vmatpush1.bf16.msra.mxu0 %v1275
    %1640 = vmatprep.subr.bf16.mxu0 %v1272
    %1641 = vmatpush1.bf16.msra.mxu0 %v1271
    %1642 = vmatprep.subr.bf16.mxu0 %v1268
    %1643 = vmatpush1.bf16.msra.mxu0 %v1267
    %1644 = vmatprep.subr.bf16.mxu0 %v1264
    %1645 = vmatpush1.bf16.msra.mxu0 %v1263
    %1646 = vmatprep.subr.bf16.mxu0 %v1260
    %1647 = vmatpush1.bf16.msra.mxu0 %v1259
    %1648 = vmatprep.subr.bf16.mxu0 %v1256
    %1649 = vmatpush1.bf16.msra.mxu0 %v1255
    %1650 = vmatprep.subr.bf16.mxu0 0
    %1651 = vmatpush2.bf16.msra.mxu0 0
    %1652 = vmatprep.subr.bf16.mxu0 0
    %1653 = vmatpush2.bf16.msra.mxu0 0
    %1654 = vmatprep.subr.bf16.mxu0 0
    %1655 = vmatpush2.bf16.msra.mxu0 0
    %1656 = vmatprep.subr.bf16.mxu0 0
    %1657 = vmatpush2.bf16.msra.mxu0 0
    %1658 = vmatprep.subr.bf16.mxu0 0
    %1659 = vmatpush2.bf16.msra.mxu0 0
    %1660 = vmatprep.subr.bf16.mxu0 0
    %1661 = vmatpush2.bf16.msra.mxu0 0
    %1662 = vmatprep.subr.bf16.mxu0 0
    %1663 = vmatpush2.bf16.msra.mxu0 0
    %1664 = vmatprep.subr.bf16.mxu0 0
    %1665 = vmatpush2.bf16.msra.mxu0 0
    %1666 = vmatprep.mubr.bf16.mxu0 0
    %1667 = vmatmul.mubr.bf16.gmra.mxu0 %v383
    %v1668 = vpop.f32.mrf.mxu0
    %v1669 = vadd.f32 %v1628, %v1668
    %v1670 = vpop.f32.mrf.mxu0
    %v1671 = vadd.f32 %v1630, %v1670
    %v1672 = vpop.f32.mrf.mxu0
    %v1673 = vpop.f32.mrf.mxu0
    %1674 = vdwg.mxu0
    %1675 = vmatprep.subr.bf16.mxu0 %v1094
    %1676 = vmatpush1.bf16.msra.mxu0 %v1093
    %1677 = vmatprep.subr.bf16.mxu0 %v1090
    %1678 = vmatpush1.bf16.msra.mxu0 %v1089
    %1679 = vmatprep.subr.bf16.mxu0 %v1086
    %1680 = vmatpush1.bf16.msra.mxu0 %v1085
    %1681 = vmatprep.subr.bf16.mxu0 %v1082
    %1682 = vmatpush1.bf16.msra.mxu0 %v1081
    %1683 = vmatprep.subr.bf16.mxu0 %v1078
    %1684 = vmatpush1.bf16.msra.mxu0 %v1077
    %1685 = vmatprep.subr.bf16.mxu0 %v1074
    %1686 = vmatpush1.bf16.msra.mxu0 %v1073
    %1687 = vmatprep.subr.bf16.mxu0 %v1070
    %1688 = vmatpush1.bf16.msra.mxu0 %v1069
    %1689 = vmatprep.subr.bf16.mxu0 %v1066
    %1690 = vmatpush1.bf16.msra.mxu0 %v1065
    %1691 = vmatprep.subr.bf16.mxu0 %v1126
    %1692 = vmatpush2.bf16.msra.mxu0 %v1125
    %1693 = vmatprep.subr.bf16.mxu0 %v1122
    %1694 = vmatpush2.bf16.msra.mxu0 %v1121
    %1695 = vmatprep.subr.bf16.mxu0 %v1118
    %1696 = vmatpush2.bf16.msra.mxu0 %v1117
    %1697 = vmatprep.subr.bf16.mxu0 %v1114
    %1698 = vmatpush2.bf16.msra.mxu0 %v1113
    %1699 = vmatprep.subr.bf16.mxu0 %v1110
    %1700 = vmatpush2.bf16.msra.mxu0 %v1109
    %1701 = vmatprep.subr.bf16.mxu0 %v1106
    %1702 = vmatpush2.bf16.msra.mxu0 %v1105
    %1703 = vmatprep.subr.bf16.mxu0 %v1102
    %1704 = vmatpush2.bf16.msra.mxu0 %v1101
    %1705 = vmatprep.subr.bf16.mxu0 %v1098
    %1706 = vmatpush2.bf16.msra.mxu0 %v1097
    %1707 = vmatprep.mubr.bf16.mxu0 %v378
    %1708 = vmatmul.mubr.bf16.gmra.mxu0 %v377
    %v1709 = vpop.f32.mrf.mxu0
    %v1710 = vadd.f32 %v357, %v1709
    %v1711 = vpop.f32.mrf.mxu0
    %v1712 = vadd.f32 %v361, %v1711
    %v1713 = vpop.f32.mrf.mxu0
    %v1714 = vpop.f32.mrf.mxu0
    %1715 = vdwg.mxu0
    %1716 = vmatprep.subr.bf16.mxu0 %v1158
    %1717 = vmatpush1.bf16.msra.mxu0 %v1157
    %1718 = vmatprep.subr.bf16.mxu0 %v1154
    %1719 = vmatpush1.bf16.msra.mxu0 %v1153
    %1720 = vmatprep.subr.bf16.mxu0 %v1150
    %1721 = vmatpush1.bf16.msra.mxu0 %v1149
    %1722 = vmatprep.subr.bf16.mxu0 %v1146
    %1723 = vmatpush1.bf16.msra.mxu0 %v1145
    %1724 = vmatprep.subr.bf16.mxu0 %v1142
    %1725 = vmatpush1.bf16.msra.mxu0 %v1141
    %1726 = vmatprep.subr.bf16.mxu0 %v1138
    %1727 = vmatpush1.bf16.msra.mxu0 %v1137
    %1728 = vmatprep.subr.bf16.mxu0 %v1134
    %1729 = vmatpush1.bf16.msra.mxu0 %v1133
    %1730 = vmatprep.subr.bf16.mxu0 %v1130
    %1731 = vmatpush1.bf16.msra.mxu0 %v1129
    %1732 = vmatprep.subr.bf16.mxu0 %v1190
    %1733 = vmatpush2.bf16.msra.mxu0 %v1189
    %1734 = vmatprep.subr.bf16.mxu0 %v1186
    %1735 = vmatpush2.bf16.msra.mxu0 %v1185
    %1736 = vmatprep.subr.bf16.mxu0 %v1182
    %1737 = vmatpush2.bf16.msra.mxu0 %v1181
    %1738 = vmatprep.subr.bf16.mxu0 %v1178
    %1739 = vmatpush2.bf16.msra.mxu0 %v1177
    %1740 = vmatprep.subr.bf16.mxu0 %v1174
    %1741 = vmatpush2.bf16.msra.mxu0 %v1173
    %1742 = vmatprep.subr.bf16.mxu0 %v1170
    %1743 = vmatpush2.bf16.msra.mxu0 %v1169
    %1744 = vmatprep.subr.bf16.mxu0 %v1166
    %1745 = vmatpush2.bf16.msra.mxu0 %v1165
    %1746 = vmatprep.subr.bf16.mxu0 %v1162
    %1747 = vmatpush2.bf16.msra.mxu0 %v1161
    %1748 = vmatprep.mubr.bf16.mxu0 %v380
    %1749 = vmatmul.mubr.bf16.gmra.mxu0 %v379
    %v1750 = vpop.f32.mrf.mxu0
    %v1751 = vadd.f32 %v1710, %v1750
    %v1752 = vpop.f32.mrf.mxu0
    %v1753 = vadd.f32 %v1712, %v1752
    %v1754 = vpop.f32.mrf.mxu0
    %v1755 = vpop.f32.mrf.mxu0
    %1756 = vdwg.mxu0
    %1757 = vmatprep.subr.bf16.mxu0 %v1222
    %1758 = vmatpush1.bf16.msra.mxu0 %v1221
    %1759 = vmatprep.subr.bf16.mxu0 %v1218
    %1760 = vmatpush1.bf16.msra.mxu0 %v1217
    %1761 = vmatprep.subr.bf16.mxu0 %v1214
    %1762 = vmatpush1.bf16.msra.mxu0 %v1213
    %1763 = vmatprep.subr.bf16.mxu0 %v1210
    %1764 = vmatpush1.bf16.msra.mxu0 %v1209
    %1765 = vmatprep.subr.bf16.mxu0 %v1206
    %1766 = vmatpush1.bf16.msra.mxu0 %v1205
    %1767 = vmatprep.subr.bf16.mxu0 %v1202
    %1768 = vmatpush1.bf16.msra.mxu0 %v1201
    %1769 = vmatprep.subr.bf16.mxu0 %v1198
    %1770 = vmatpush1.bf16.msra.mxu0 %v1197
    %1771 = vmatprep.subr.bf16.mxu0 %v1194
    %1772 = vmatpush1.bf16.msra.mxu0 %v1193
    %1773 = vmatprep.subr.bf16.mxu0 %v1254
    %1774 = vmatpush2.bf16.msra.mxu0 %v1253
    %1775 = vmatprep.subr.bf16.mxu0 %v1250
    %1776 = vmatpush2.bf16.msra.mxu0 %v1249
    %1777 = vmatprep.subr.bf16.mxu0 %v1246
    %1778 = vmatpush2.bf16.msra.mxu0 %v1245
    %1779 = vmatprep.subr.bf16.mxu0 %v1242
    %1780 = vmatpush2.bf16.msra.mxu0 %v1241
    %1781 = vmatprep.subr.bf16.mxu0 %v1238
    %1782 = vmatpush2.bf16.msra.mxu0 %v1237
    %1783 = vmatprep.subr.bf16.mxu0 %v1234
    %1784 = vmatpush2.bf16.msra.mxu0 %v1233
    %1785 = vmatprep.subr.bf16.mxu0 %v1230
    %1786 = vmatpush2.bf16.msra.mxu0 %v1229
    %1787 = vmatprep.subr.bf16.mxu0 %v1226
    %1788 = vmatpush2.bf16.msra.mxu0 %v1225
    %1789 = vmatprep.mubr.bf16.mxu0 %v382
    %1790 = vmatmul.mubr.bf16.gmra.mxu0 %v381
    %v1791 = vpop.f32.mrf.mxu0
    %v1792 = vadd.f32 %v1751, %v1791
    %v1793 = vpop.f32.mrf.mxu0
    %v1794 = vadd.f32 %v1753, %v1793
    %v1795 = vpop.f32.mrf.mxu0
    %v1796 = vpop.f32.mrf.mxu0
    %1797 = vdwg.mxu0
    %1798 = vmatprep.subr.bf16.mxu0 %v1286
    %1799 = vmatpush1.bf16.msra.mxu0 %v1285
    %1800 = vmatprep.subr.bf16.mxu0 %v1282
    %1801 = vmatpush1.bf16.msra.mxu0 %v1281
    %1802 = vmatprep.subr.bf16.mxu0 %v1278
    %1803 = vmatpush1.bf16.msra.mxu0 %v1277
    %1804 = vmatprep.subr.bf16.mxu0 %v1274
    %1805 = vmatpush1.bf16.msra.mxu0 %v1273
    %1806 = vmatprep.subr.bf16.mxu0 %v1270
    %1807 = vmatpush1.bf16.msra.mxu0 %v1269
    %1808 = vmatprep.subr.bf16.mxu0 %v1266
    %1809 = vmatpush1.bf16.msra.mxu0 %v1265
    %1810 = vmatprep.subr.bf16.mxu0 %v1262
    %1811 = vmatpush1.bf16.msra.mxu0 %v1261
    %1812 = vmatprep.subr.bf16.mxu0 %v1258
    %1813 = vmatpush1.bf16.msra.mxu0 %v1257
    %1814 = vmatprep.subr.bf16.mxu0 0
    %1815 = vmatpush2.bf16.msra.mxu0 0
    %1816 = vmatprep.subr.bf16.mxu0 0
    %1817 = vmatpush2.bf16.msra.mxu0 0
    %1818 = vmatprep.subr.bf16.mxu0 0
    %1819 = vmatpush2.bf16.msra.mxu0 0
    %1820 = vmatprep.subr.bf16.mxu0 0
    %1821 = vmatpush2.bf16.msra.mxu0 0
    %1822 = vmatprep.subr.bf16.mxu0 0
    %1823 = vmatpush2.bf16.msra.mxu0 0
    %1824 = vmatprep.subr.bf16.mxu0 0
    %1825 = vmatpush2.bf16.msra.mxu0 0
    %1826 = vmatprep.subr.bf16.mxu0 0
    %1827 = vmatpush2.bf16.msra.mxu0 0
    %1828 = vmatprep.subr.bf16.mxu0 0
    %1829 = vmatpush2.bf16.msra.mxu0 0
    %1830 = vmatprep.mubr.bf16.mxu0 0
    %1831 = vmatmul.mubr.bf16.gmra.mxu0 %v383
    %v1832 = vpop.f32.mrf.mxu0
    %v1833 = vadd.f32 %v1792, %v1832
    %v1834 = vpop.f32.mrf.mxu0
    %v1835 = vadd.f32 %v1794, %v1834
    %v1836 = vpop.f32.mrf.mxu0
    %v1837 = vpop.f32.mrf.mxu0
    %1838 = vdwg.mxu0
    %v1839 = vmax.f32 %v1669, 0.0
    %v1840 = vmax.f32 %v1671, 0.0
    %v1841 = vmax.f32 %v1833, 0.0
    %v1842 = vmax.f32 %v1835, 0.0
    %v1843 = vpack.c.bf16 %v1839, %v1839
    %v1844 = vpack.c.bf16 %v1840, %v1840
    %v1845 = vpack.c.bf16 %v1841, %v1841
    %v1846 = vpack.c.bf16 %v1842, %v1842
    %v1847 = vld [vmem:[%s3] sm:$0xff]
    %v1848 = vld [vmem:[%s3 + $0x8] sm:$0xff]
    %v1849 = vld [vmem:[%s3 + $0x10] sm:$0xff]
    %v1850 = vld [vmem:[%s3 + $0x18] sm:$0xff]
    %v1851 = vld [vmem:[%s3 + $0x20] sm:$0xff]
    %v1852 = vld [vmem:[%s3 + $0x28] sm:$0xff]
    %v1853 = vld [vmem:[%s3 + $0x30] sm:$0xff]
    %v1854 = vld [vmem:[%s3 + $0x38] sm:$0xff]
    %v1855 = vld [vmem:[%s3 + $0x40] sm:$0xff]
    %v1856 = vld [vmem:[%s3 + $0x48] sm:$0xff]
    %v1857 = vld [vmem:[%s3 + $0x50] sm:$0xff]
    %v1858 = vld [vmem:[%s3 + $0x58] sm:$0xff]
    %v1859 = vld [vmem:[%s3 + $0x60] sm:$0xff]
    %v1860 = vld [vmem:[%s3 + $0x68] sm:$0xff]
    %v1861 = vld [vmem:[%s3 + $0x70] sm:$0xff]
    %v1862 = vld [vmem:[%s3 + $0x78] sm:$0xff]
    %v1863 = vld [vmem:[%s3 + $0x80] sm:$0xff]
    %v1864 = vld [vmem:[%s3 + $0x88] sm:$0xff]
    %v1865 = vld [vmem:[%s3 + $0x90] sm:$0xff]
    %v1866 = vld [vmem:[%s3 + $0x98] sm:$0xff]
    %v1867 = vld [vmem:[%s3 + $0xa0] sm:$0xff]
    %v1868 = vld [vmem:[%s3 + $0xa8] sm:$0xff]
    %v1869 = vld [vmem:[%s3 + $0xb0] sm:$0xff]
    %v1870 = vld [vmem:[%s3 + $0xb8] sm:$0xff]
    %v1871 = vld [vmem:[%s3 + $0xc0] sm:$0xff]
    %v1872 = vld [vmem:[%s3 + $0xc8] sm:$0xff]
    %v1873 = vld [vmem:[%s3 + $0xd0] sm:$0xff]
    %v1874 = vld [vmem:[%s3 + $0xd8] sm:$0xff]
    %v1875 = vld [vmem:[%s3 + $0xe0] sm:$0xff]
    %v1876 = vld [vmem:[%s3 + $0xe8] sm:$0xff]
    %v1877 = vld [vmem:[%s3 + $0xf0] sm:$0xff]
    %v1878 = vld [vmem:[%s3 + $0xf8] sm:$0xff]
    %v1879 = vld [vmem:[%s3 + $0x100] sm:$0xff]
    %v1880 = vld [vmem:[%s3 + $0x108] sm:$0xff]
    %v1881 = vld [vmem:[%s3 + $0x110] sm:$0xff]
    %v1882 = vld [vmem:[%s3 + $0x118] sm:$0xff]
    %v1883 = vld [vmem:[%s3 + $0x120] sm:$0xff]
    %v1884 = vld [vmem:[%s3 + $0x128] sm:$0xff]
    %v1885 = vld [vmem:[%s3 + $0x130] sm:$0xff]
    %v1886 = vld [vmem:[%s3 + $0x138] sm:$0xff]
    %v1887 = vld [vmem:[%s3 + $0x140] sm:$0xff]
    %v1888 = vld [vmem:[%s3 + $0x148] sm:$0xff]
    %v1889 = vld [vmem:[%s3 + $0x150] sm:$0xff]
    %v1890 = vld [vmem:[%s3 + $0x158] sm:$0xff]
    %v1891 = vld [vmem:[%s3 + $0x160] sm:$0xff]
    %v1892 = vld [vmem:[%s3 + $0x168] sm:$0xff]
    %v1893 = vld [vmem:[%s3 + $0x170] sm:$0xff]
    %v1894 = vld [vmem:[%s3 + $0x178] sm:$0xff]
    %v1895 = vld [vmem:[%s3 + $0x180] sm:$0xff]
    %v1896 = vld [vmem:[%s3 + $0x188] sm:$0xff]
    %v1897 = vld [vmem:[%s3 + $0x190] sm:$0xff]
    %v1898 = vld [vmem:[%s3 + $0x198] sm:$0xff]
    %v1899 = vld [vmem:[%s3 + $0x1a0] sm:$0xff]
    %v1900 = vld [vmem:[%s3 + $0x1a8] sm:$0xff]
    %v1901 = vld [vmem:[%s3 + $0x1b0] sm:$0xff]
    %v1902 = vld [vmem:[%s3 + $0x1b8] sm:$0xff]
    %v1903 = vld [vmem:[%s3 + $0x1c0] sm:$0xff]
    %v1904 = vld [vmem:[%s3 + $0x1c8] sm:$0xff]
    %v1905 = vld [vmem:[%s3 + $0x1d0] sm:$0xff]
    %v1906 = vld [vmem:[%s3 + $0x1d8] sm:$0xff]
    %v1907 = vld [vmem:[%s3 + $0x1e0] sm:$0xff]
    %v1908 = vld [vmem:[%s3 + $0x1e8] sm:$0xff]
    %v1909 = vld [vmem:[%s3 + $0x1f0] sm:$0xff]
    %v1910 = vld [vmem:[%s3 + $0x1f8] sm:$0xff]
    %v1911 = vld [vmem:[%s4] sm:$0x3]
    %v1913 = vlaneseq
    %v1914 = vshrl.u32 %v1913, 7
    %v1915 = vsub.s32 0, %v1914
    %v1916 = vrot.slane %v1911, %v1915
    %v1917 = vlaneseq
    %v1918 = vshrl.u32 %v1917, 7
    %v1919 = vsub.s32 1, %v1918
    %v1920 = vrot.slane %v1911, %v1919
    %v1987 = vunpack.c.l.b16 %v1847
    %v1988 = vunpack.c.h.b16 %v1847
    %v1989 = vunpack.c.l.b16 %v1848
    %v1990 = vunpack.c.h.b16 %v1848
    %v1991 = vunpack.c.l.b16 %v1849
    %v1992 = vunpack.c.h.b16 %v1849
    %v1993 = vunpack.c.l.b16 %v1850
    %v1994 = vunpack.c.h.b16 %v1850
    %v1995 = vunpack.c.l.b16 %v1851
    %v1996 = vunpack.c.h.b16 %v1851
    %v1997 = vunpack.c.l.b16 %v1852
    %v1998 = vunpack.c.h.b16 %v1852
    %v1999 = vunpack.c.l.b16 %v1853
    %v2000 = vunpack.c.h.b16 %v1853
    %v2001 = vunpack.c.l.b16 %v1854
    %v2002 = vunpack.c.h.b16 %v1854
    %v2003 = vunpack.c.l.b16 %v1855
    %v2004 = vunpack.c.h.b16 %v1855
    %v2005 = vunpack.c.l.b16 %v1856
    %v2006 = vunpack.c.h.b16 %v1856
    %v2007 = vunpack.c.l.b16 %v1857
    %v2008 = vunpack.c.h.b16 %v1857
    %v2009 = vunpack.c.l.b16 %v1858
    %v2010 = vunpack.c.h.b16 %v1858
    %v2011 = vunpack.c.l.b16 %v1859
    %v2012 = vunpack.c.h.b16 %v1859
    %v2013 = vunpack.c.l.b16 %v1860
    %v2014 = vunpack.c.h.b16 %v1860
    %v2015 = vunpack.c.l.b16 %v1861
    %v2016 = vunpack.c.h.b16 %v1861
    %v2017 = vunpack.c.l.b16 %v1862
    %v2018 = vunpack.c.h.b16 %v1862
    %v2019 = vunpack.c.l.b16 %v1863
    %v2020 = vunpack.c.h.b16 %v1863
    %v2021 = vunpack.c.l.b16 %v1864
    %v2022 = vunpack.c.h.b16 %v1864
    %v2023 = vunpack.c.l.b16 %v1865
    %v2024 = vunpack.c.h.b16 %v1865
    %v2025 = vunpack.c.l.b16 %v1866
    %v2026 = vunpack.c.h.b16 %v1866
    %v2027 = vunpack.c.l.b16 %v1867
    %v2028 = vunpack.c.h.b16 %v1867
    %v2029 = vunpack.c.l.b16 %v1868
    %v2030 = vunpack.c.h.b16 %v1868
    %v2031 = vunpack.c.l.b16 %v1869
    %v2032 = vunpack.c.h.b16 %v1869
    %v2033 = vunpack.c.l.b16 %v1870
    %v2034 = vunpack.c.h.b16 %v1870
    %v2035 = vunpack.c.l.b16 %v1871
    %v2036 = vunpack.c.h.b16 %v1871
    %v2037 = vunpack.c.l.b16 %v1872
    %v2038 = vunpack.c.h.b16 %v1872
    %v2039 = vunpack.c.l.b16 %v1873
    %v2040 = vunpack.c.h.b16 %v1873
    %v2041 = vunpack.c.l.b16 %v1874
    %v2042 = vunpack.c.h.b16 %v1874
    %v2043 = vunpack.c.l.b16 %v1875
    %v2044 = vunpack.c.h.b16 %v1875
    %v2045 = vunpack.c.l.b16 %v1876
    %v2046 = vunpack.c.h.b16 %v1876
    %v2047 = vunpack.c.l.b16 %v1877
    %v2048 = vunpack.c.h.b16 %v1877
    %v2049 = vunpack.c.l.b16 %v1878
    %v2050 = vunpack.c.h.b16 %v1878
    %v2051 = vunpack.c.l.b16 %v1879
    %v2052 = vunpack.c.h.b16 %v1879
    %v2053 = vunpack.c.l.b16 %v1880
    %v2054 = vunpack.c.h.b16 %v1880
    %v2055 = vunpack.c.l.b16 %v1881
    %v2056 = vunpack.c.h.b16 %v1881
    %v2057 = vunpack.c.l.b16 %v1882
    %v2058 = vunpack.c.h.b16 %v1882
    %v2059 = vunpack.c.l.b16 %v1883
    %v2060 = vunpack.c.h.b16 %v1883
    %v2061 = vunpack.c.l.b16 %v1884
    %v2062 = vunpack.c.h.b16 %v1884
    %v2063 = vunpack.c.l.b16 %v1885
    %v2064 = vunpack.c.h.b16 %v1885
    %v2065 = vunpack.c.l.b16 %v1886
    %v2066 = vunpack.c.h.b16 %v1886
    %v2067 = vunpack.c.l.b16 %v1887
    %v2068 = vunpack.c.h.b16 %v1887
    %v2069 = vunpack.c.l.b16 %v1888
    %v2070 = vunpack.c.h.b16 %v1888
    %v2071 = vunpack.c.l.b16 %v1889
    %v2072 = vunpack.c.h.b16 %v1889
    %v2073 = vunpack.c.l.b16 %v1890
    %v2074 = vunpack.c.h.b16 %v1890
    %v2075 = vunpack.c.l.b16 %v1891
    %v2076 = vunpack.c.h.b16 %v1891
    %v2077 = vunpack.c.l.b16 %v1892
    %v2078 = vunpack.c.h.b16 %v1892
    %v2079 = vunpack.c.l.b16 %v1893
    %v2080 = vunpack.c.h.b16 %v1893
    %v2081 = vunpack.c.l.b16 %v1894
    %v2082 = vunpack.c.h.b16 %v1894
    %v2083 = vunpack.c.l.b16 %v1895
    %v2084 = vunpack.c.h.b16 %v1895
    %v2085 = vunpack.c.l.b16 %v1896
    %v2086 = vunpack.c.h.b16 %v1896
    %v2087 = vunpack.c.l.b16 %v1897
    %v2088 = vunpack.c.h.b16 %v1897
    %v2089 = vunpack.c.l.b16 %v1898
    %v2090 = vunpack.c.h.b16 %v1898
    %v2091 = vunpack.c.l.b16 %v1899
    %v2092 = vunpack.c.h.b16 %v1899
    %v2093 = vunpack.c.l.b16 %v1900
    %v2094 = vunpack.c.h.b16 %v1900
    %v2095 = vunpack.c.l.b16 %v1901
    %v2096 = vunpack.c.h.b16 %v1901
    %v2097 = vunpack.c.l.b16 %v1902
    %v2098 = vunpack.c.h.b16 %v1902
    %v2099 = vunpack.c.l.b16 %v1903
    %v2100 = vunpack.c.h.b16 %v1903
    %v2101 = vunpack.c.l.b16 %v1904
    %v2102 = vunpack.c.h.b16 %v1904
    %v2103 = vunpack.c.l.b16 %v1905
    %v2104 = vunpack.c.h.b16 %v1905
    %v2105 = vunpack.c.l.b16 %v1906
    %v2106 = vunpack.c.h.b16 %v1906
    %v2107 = vunpack.c.l.b16 %v1907
    %v2108 = vunpack.c.h.b16 %v1907
    %v2109 = vunpack.c.l.b16 %v1908
    %v2110 = vunpack.c.h.b16 %v1908
    %v2111 = vunpack.c.l.b16 %v1909
    %v2112 = vunpack.c.h.b16 %v1909
    %v2113 = vunpack.c.l.b16 %v1910
    %v2114 = vunpack.c.h.b16 %v1910
    %v2115 = vpack.c.b16 %v1989, %v1987
    %v2116 = vpack.c.b16 %v1990, %v1988
    %v2117 = vpack.c.b16 %v1993, %v1991
    %v2118 = vpack.c.b16 %v1994, %v1992
    %v2119 = vpack.c.b16 %v1997, %v1995
    %v2120 = vpack.c.b16 %v1998, %v1996
    %v2121 = vpack.c.b16 %v2001, %v1999
    %v2122 = vpack.c.b16 %v2002, %v2000
    %v2123 = vpack.c.b16 %v2005, %v2003
    %v2124 = vpack.c.b16 %v2006, %v2004
    %v2125 = vpack.c.b16 %v2009, %v2007
    %v2126 = vpack.c.b16 %v2010, %v2008
    %v2127 = vpack.c.b16 %v2013, %v2011
    %v2128 = vpack.c.b16 %v2014, %v2012
    %v2129 = vpack.c.b16 %v2017, %v2015
    %v2130 = vpack.c.b16 %v2018, %v2016
    %v2131 = vpack.c.b16 %v2021, %v2019
    %v2132 = vpack.c.b16 %v2022, %v2020
    %v2133 = vpack.c.b16 %v2025, %v2023
    %v2134 = vpack.c.b16 %v2026, %v2024
    %v2135 = vpack.c.b16 %v2029, %v2027
    %v2136 = vpack.c.b16 %v2030, %v2028
    %v2137 = vpack.c.b16 %v2033, %v2031
    %v2138 = vpack.c.b16 %v2034, %v2032
    %v2139 = vpack.c.b16 %v2037, %v2035
    %v2140 = vpack.c.b16 %v2038, %v2036
    %v2141 = vpack.c.b16 %v2041, %v2039
    %v2142 = vpack.c.b16 %v2042, %v2040
    %v2143 = vpack.c.b16 %v2045, %v2043
    %v2144 = vpack.c.b16 %v2046, %v2044
    %v2145 = vpack.c.b16 %v2049, %v2047
    %v2146 = vpack.c.b16 %v2050, %v2048
    %v2147 = vpack.c.b16 %v2053, %v2051
    %v2148 = vpack.c.b16 %v2054, %v2052
    %v2149 = vpack.c.b16 %v2057, %v2055
    %v2150 = vpack.c.b16 %v2058, %v2056
    %v2151 = vpack.c.b16 %v2061, %v2059
    %v2152 = vpack.c.b16 %v2062, %v2060
    %v2153 = vpack.c.b16 %v2065, %v2063
    %v2154 = vpack.c.b16 %v2066, %v2064
    %v2155 = vpack.c.b16 %v2069, %v2067
    %v2156 = vpack.c.b16 %v2070, %v2068
    %v2157 = vpack.c.b16 %v2073, %v2071
    %v2158 = vpack.c.b16 %v2074, %v2072
    %v2159 = vpack.c.b16 %v2077, %v2075
    %v2160 = vpack.c.b16 %v2078, %v2076
    %v2161 = vpack.c.b16 %v2081, %v2079
    %v2162 = vpack.c.b16 %v2082, %v2080
    %v2163 = vpack.c.b16 %v2085, %v2083
    %v2164 = vpack.c.b16 %v2086, %v2084
    %v2165 = vpack.c.b16 %v2089, %v2087
    %v2166 = vpack.c.b16 %v2090, %v2088
    %v2167 = vpack.c.b16 %v2093, %v2091
    %v2168 = vpack.c.b16 %v2094, %v2092
    %v2169 = vpack.c.b16 %v2097, %v2095
    %v2170 = vpack.c.b16 %v2098, %v2096
    %v2171 = vpack.c.b16 %v2101, %v2099
    %v2172 = vpack.c.b16 %v2102, %v2100
    %v2173 = vpack.c.b16 %v2105, %v2103
    %v2174 = vpack.c.b16 %v2106, %v2104
    %v2175 = vpack.c.b16 %v2109, %v2107
    %v2176 = vpack.c.b16 %v2110, %v2108
    %v2177 = vpack.c.b16 %v2113, %v2111
    %v2178 = vpack.c.b16 %v2114, %v2112
    %2243 = vmatprep.subr.bf16.mxu0 %v2130
    %2244 = vmatpush1.bf16.msra.mxu0 %v2129
    %2245 = vmatprep.subr.bf16.mxu0 %v2128
    %2246 = vmatpush1.bf16.msra.mxu0 %v2127
    %2247 = vmatprep.subr.bf16.mxu0 %v2126
    %2248 = vmatpush1.bf16.msra.mxu0 %v2125
    %2249 = vmatprep.subr.bf16.mxu0 %v2124
    %2250 = vmatpush1.bf16.msra.mxu0 %v2123
    %2251 = vmatprep.subr.bf16.mxu0 %v2122
    %2252 = vmatpush1.bf16.msra.mxu0 %v2121
    %2253 = vmatprep.subr.bf16.mxu0 %v2120
    %2254 = vmatpush1.bf16.msra.mxu0 %v2119
    %2255 = vmatprep.subr.bf16.mxu0 %v2118
    %2256 = vmatpush1.bf16.msra.mxu0 %v2117
    %2257 = vmatprep.subr.bf16.mxu0 %v2116
    %2258 = vmatpush1.bf16.msra.mxu0 %v2115
    %2259 = vmatprep.subr.bf16.mxu0 %v2146
    %2260 = vmatpush2.bf16.msra.mxu0 %v2145
    %2261 = vmatprep.subr.bf16.mxu0 %v2144
    %2262 = vmatpush2.bf16.msra.mxu0 %v2143
    %2263 = vmatprep.subr.bf16.mxu0 %v2142
    %2264 = vmatpush2.bf16.msra.mxu0 %v2141
    %2265 = vmatprep.subr.bf16.mxu0 %v2140
    %2266 = vmatpush2.bf16.msra.mxu0 %v2139
    %2267 = vmatprep.subr.bf16.mxu0 %v2138
    %2268 = vmatpush2.bf16.msra.mxu0 %v2137
    %2269 = vmatprep.subr.bf16.mxu0 %v2136
    %2270 = vmatpush2.bf16.msra.mxu0 %v2135
    %2271 = vmatprep.subr.bf16.mxu0 %v2134
    %2272 = vmatpush2.bf16.msra.mxu0 %v2133
    %2273 = vmatprep.subr.bf16.mxu0 %v2132
    %2274 = vmatpush2.bf16.msra.mxu0 %v2131
    %2275 = vmatprep.mubr.bf16.mxu0 %v1844
    %2276 = vmatmul.mubr.bf16.gmra.mxu0 %v1843
    %v2277 = vpop.f32.mrf.mxu0
    %v2278 = vadd.f32 %v1916, %v2277
    %v2279 = vpop.f32.mrf.mxu0
    %v2280 = vadd.f32 %v1920, %v2279
    %v2281 = vpop.f32.mrf.mxu0
    %v2282 = vpop.f32.mrf.mxu0
    %2283 = vdwg.mxu0
    %2284 = vmatprep.subr.bf16.mxu0 %v2162
    %2285 = vmatpush1.bf16.msra.mxu0 %v2161
    %2286 = vmatprep.subr.bf16.mxu0 %v2160
    %2287 = vmatpush1.bf16.msra.mxu0 %v2159
    %2288 = vmatprep.subr.bf16.mxu0 %v2158
    %2289 = vmatpush1.bf16.msra.mxu0 %v2157
    %2290 = vmatprep.subr.bf16.mxu0 %v2156
    %2291 = vmatpush1.bf16.msra.mxu0 %v2155
    %2292 = vmatprep.subr.bf16.mxu0 %v2154
    %2293 = vmatpush1.bf16.msra.mxu0 %v2153
    %2294 = vmatprep.subr.bf16.mxu0 %v2152
    %2295 = vmatpush1.bf16.msra.mxu0 %v2151
    %2296 = vmatprep.subr.bf16.mxu0 %v2150
    %2297 = vmatpush1.bf16.msra.mxu0 %v2149
    %2298 = vmatprep.subr.bf16.mxu0 %v2148
    %2299 = vmatpush1.bf16.msra.mxu0 %v2147
    %2300 = vmatprep.subr.bf16.mxu0 %v2178
    %2301 = vmatpush2.bf16.msra.mxu0 %v2177
    %2302 = vmatprep.subr.bf16.mxu0 %v2176
    %2303 = vmatpush2.bf16.msra.mxu0 %v2175
    %2304 = vmatprep.subr.bf16.mxu0 %v2174
    %2305 = vmatpush2.bf16.msra.mxu0 %v2173
    %2306 = vmatprep.subr.bf16.mxu0 %v2172
    %2307 = vmatpush2.bf16.msra.mxu0 %v2171
    %2308 = vmatprep.subr.bf16.mxu0 %v2170
    %2309 = vmatpush2.bf16.msra.mxu0 %v2169
    %2310 = vmatprep.subr.bf16.mxu0 %v2168
    %2311 = vmatpush2.bf16.msra.mxu0 %v2167
    %2312 = vmatprep.subr.bf16.mxu0 %v2166
    %2313 = vmatpush2.bf16.msra.mxu0 %v2165
    %2314 = vmatprep.subr.bf16.mxu0 %v2164
    %2315 = vmatpush2.bf16.msra.mxu0 %v2163
    %2316 = vmatprep.mubr.bf16.mxu0 %v1846
    %2317 = vmatmul.mubr.bf16.gmra.mxu0 %v1845
    %v2318 = vpop.f32.mrf.mxu0
    %v2319 = vadd.f32 %v2278, %v2318
    %v2320 = vpop.f32.mrf.mxu0
    %v2321 = vadd.f32 %v2280, %v2320
    %v2322 = vpop.f32.mrf.mxu0
    %v2323 = vpop.f32.mrf.mxu0
    %2324 = vdwg.mxu0
    %v2325 = vmax.f32 %v2319, 0.0
    %v2326 = vmax.f32 %v2321, 0.0
    %v2327 = vpack.c.bf16 %v2325, %v2325
    %v2328 = vpack.c.bf16 %v2326, %v2326
    %v2329 = vld [vmem:[#allocation7] sm:$0xf]
    %v2330 = vld [vmem:[#allocation7 + $0x4] sm:$0xf]
    %v2331 = vld [vmem:[#allocation7 + $0x8] sm:$0xf]
    %v2332 = vld [vmem:[#allocation7 + $0xc] sm:$0xf]
    %v2333 = vld [vmem:[#allocation7 + $0x10] sm:$0xf]
    %v2334 = vld [vmem:[#allocation7 + $0x14] sm:$0xf]
    %v2335 = vld [vmem:[#allocation7 + $0x18] sm:$0xf]
    %v2336 = vld [vmem:[#allocation7 + $0x1c] sm:$0xf]
    %v2337 = vld [vmem:[#allocation7 + $0x20] sm:$0xf]
    %v2338 = vld [vmem:[#allocation7 + $0x24] sm:$0xf]
    %v2339 = vld [vmem:[#allocation7 + $0x28] sm:$0xf]
    %v2340 = vld [vmem:[#allocation7 + $0x2c] sm:$0xf]
    %v2341 = vld [vmem:[#allocation7 + $0x30] sm:$0xf]
    %v2342 = vld [vmem:[#allocation7 + $0x34] sm:$0xf]
    %v2343 = vld [vmem:[#allocation7 + $0x38] sm:$0xf]
    %v2344 = vld [vmem:[#allocation7 + $0x3c] sm:$0xf]
    %v2345 = vld [vmem:[#allocation7 + $0x40] sm:$0xf]
    %v2346 = vld [vmem:[#allocation7 + $0x44] sm:$0xf]
    %v2347 = vld [vmem:[#allocation7 + $0x48] sm:$0xf]
    %v2348 = vld [vmem:[#allocation7 + $0x4c] sm:$0xf]
    %v2349 = vld [vmem:[#allocation7 + $0x50] sm:$0xf]
    %v2350 = vld [vmem:[#allocation7 + $0x54] sm:$0xf]
    %v2351 = vld [vmem:[#allocation7 + $0x58] sm:$0xf]
    %v2352 = vld [vmem:[#allocation7 + $0x5c] sm:$0xf]
    %v2353 = vld [vmem:[#allocation7 + $0x60] sm:$0xf]
    %v2354 = vld [vmem:[#allocation7 + $0x64] sm:$0xf]
    %v2355 = vld [vmem:[#allocation7 + $0x68] sm:$0xf]
    %v2356 = vld [vmem:[#allocation7 + $0x6c] sm:$0xf]
    %v2357 = vld [vmem:[#allocation7 + $0x70] sm:$0xf]
    %v2358 = vld [vmem:[#allocation7 + $0x74] sm:$0xf]
    %v2359 = vld [vmem:[#allocation7 + $0x78] sm:$0xf]
    %v2360 = vld [vmem:[#allocation7 + $0x7c] sm:$0xf]
    %v2361 = vld [vmem:[%s6] sm:$0x1]
    %v2363 = vlaneseq
    %v2364 = vshrl.u32 %v2363, 7
    %v2365 = vsub.s32 0, %v2364
    %v2366 = vrot.slane %v2361, %v2365
    %v2400 = vunpack.c.l.b16 %v2329
    %v2401 = vunpack.c.l.b16 %v2330
    %v2402 = vunpack.c.l.b16 %v2331
    %v2403 = vunpack.c.l.b16 %v2332
    %v2404 = vunpack.c.l.b16 %v2333
    %v2405 = vunpack.c.l.b16 %v2334
    %v2406 = vunpack.c.l.b16 %v2335
    %v2407 = vunpack.c.l.b16 %v2336
    %v2408 = vunpack.c.l.b16 %v2337
    %v2409 = vunpack.c.l.b16 %v2338
    %v2410 = vunpack.c.l.b16 %v2339
    %v2411 = vunpack.c.l.b16 %v2340
    %v2412 = vunpack.c.l.b16 %v2341
    %v2413 = vunpack.c.l.b16 %v2342
    %v2414 = vunpack.c.l.b16 %v2343
    %v2415 = vunpack.c.l.b16 %v2344
    %v2416 = vunpack.c.l.b16 %v2345
    %v2417 = vunpack.c.l.b16 %v2346
    %v2418 = vunpack.c.l.b16 %v2347
    %v2419 = vunpack.c.l.b16 %v2348
    %v2420 = vunpack.c.l.b16 %v2349
    %v2421 = vunpack.c.l.b16 %v2350
    %v2422 = vunpack.c.l.b16 %v2351
    %v2423 = vunpack.c.l.b16 %v2352
    %v2424 = vunpack.c.l.b16 %v2353
    %v2425 = vunpack.c.l.b16 %v2354
    %v2426 = vunpack.c.l.b16 %v2355
    %v2427 = vunpack.c.l.b16 %v2356
    %v2428 = vunpack.c.l.b16 %v2357
    %v2429 = vunpack.c.l.b16 %v2358
    %v2430 = vunpack.c.l.b16 %v2359
    %v2431 = vunpack.c.l.b16 %v2360
    %v2432 = vpack.c.b16 %v2401, %v2400
    %v2433 = vpack.c.b16 %v2403, %v2402
    %v2434 = vpack.c.b16 %v2405, %v2404
    %v2435 = vpack.c.b16 %v2407, %v2406
    %v2436 = vpack.c.b16 %v2409, %v2408
    %v2437 = vpack.c.b16 %v2411, %v2410
    %v2438 = vpack.c.b16 %v2413, %v2412
    %v2439 = vpack.c.b16 %v2415, %v2414
    %v2440 = vpack.c.b16 %v2417, %v2416
    %v2441 = vpack.c.b16 %v2419, %v2418
    %v2442 = vpack.c.b16 %v2421, %v2420
    %v2443 = vpack.c.b16 %v2423, %v2422
    %v2444 = vpack.c.b16 %v2425, %v2424
    %v2445 = vpack.c.b16 %v2427, %v2426
    %v2446 = vpack.c.b16 %v2429, %v2428
    %v2447 = vpack.c.b16 %v2431, %v2430
    %2464 = vmatprep.subr.bf16.mxu0 0
    %2465 = vmatpush1.bf16.msra.mxu0 %v2439
    %2466 = vmatprep.subr.bf16.mxu0 0
    %2467 = vmatpush1.bf16.msra.mxu0 %v2438
    %2468 = vmatprep.subr.bf16.mxu0 0
    %2469 = vmatpush1.bf16.msra.mxu0 %v2437
    %2470 = vmatprep.subr.bf16.mxu0 0
    %2471 = vmatpush1.bf16.msra.mxu0 %v2436
    %2472 = vmatprep.subr.bf16.mxu0 0
    %2473 = vmatpush1.bf16.msra.mxu0 %v2435
    %2474 = vmatprep.subr.bf16.mxu0 0
    %2475 = vmatpush1.bf16.msra.mxu0 %v2434
    %2476 = vmatprep.subr.bf16.mxu0 0
    %2477 = vmatpush1.bf16.msra.mxu0 %v2433
    %2478 = vmatprep.subr.bf16.mxu0 0
    %2479 = vmatpush1.bf16.msra.mxu0 %v2432
    %2480 = vmatprep.subr.bf16.mxu0 0
    %2481 = vmatpush2.bf16.msra.mxu0 %v2447
    %2482 = vmatprep.subr.bf16.mxu0 0
    %2483 = vmatpush2.bf16.msra.mxu0 %v2446
    %2484 = vmatprep.subr.bf16.mxu0 0
    %2485 = vmatpush2.bf16.msra.mxu0 %v2445
    %2486 = vmatprep.subr.bf16.mxu0 0
    %2487 = vmatpush2.bf16.msra.mxu0 %v2444
    %2488 = vmatprep.subr.bf16.mxu0 0
    %2489 = vmatpush2.bf16.msra.mxu0 %v2443
    %2490 = vmatprep.subr.bf16.mxu0 0
    %2491 = vmatpush2.bf16.msra.mxu0 %v2442
    %2492 = vmatprep.subr.bf16.mxu0 0
    %2493 = vmatpush2.bf16.msra.mxu0 %v2441
    %2494 = vmatprep.subr.bf16.mxu0 0
    %2495 = vmatpush2.bf16.msra.mxu0 %v2440
    %2496 = vmatprep.mubr.bf16.mxu0 %v2328
    %2497 = vmatmul.mubr.bf16.gmra.mxu0 %v2327
    %v2498 = vpop.f32.mrf.mxu0
    %v2499 = vadd.f32 %v2366, %v2498
    %v2500 = vpop.f32.mrf.mxu0
    %v2501 = vpop.f32.mrf.mxu0
    %v2502 = vpop.f32.mrf.mxu0
    %2503 = vdwg.mxu0
    %v2504 = vmax.f32 %v2499, 0.0
    %v2505 = vpack.c.bf16 %v2504, %v2504
    %v2506 = vld [vmem:[#allocation8] sm:$0xf]
    %v2507 = vld [vmem:[#allocation8 + $0x4] sm:$0xf]
    %v2508 = vld [vmem:[#allocation8 + $0x8] sm:$0xf]
    %v2509 = vld [vmem:[#allocation8 + $0xc] sm:$0xf]
    %v2510 = vld [vmem:[#allocation8 + $0x10] sm:$0xf]
    %v2511 = vld [vmem:[#allocation8 + $0x14] sm:$0xf]
    %v2512 = vld [vmem:[#allocation8 + $0x18] sm:$0xf]
    %v2513 = vld [vmem:[#allocation8 + $0x1c] sm:$0xf]
    %v2514 = vld [vmem:[#allocation8 + $0x20] sm:$0xf]
    %v2515 = vld [vmem:[#allocation8 + $0x24] sm:$0xf]
    %v2516 = vld [vmem:[#allocation8 + $0x28] sm:$0xf]
    %v2517 = vld [vmem:[#allocation8 + $0x2c] sm:$0xf]
    %v2518 = vld [vmem:[#allocation8 + $0x30] sm:$0xf]
    %v2519 = vld [vmem:[#allocation8 + $0x34] sm:$0xf]
    %v2520 = vld [vmem:[#allocation8 + $0x38] sm:$0xf]
    %v2521 = vld [vmem:[#allocation8 + $0x3c] sm:$0xf]
    %v2522 = vld [vmem:[#allocation10] sm:$0x1]
    %v2524 = vlaneseq
    %v2525 = vshrl.u32 %v2524, 7
    %v2526 = vsub.s32 0, %v2525
    %v2527 = vrot.slane %v2522, %v2526
    %v2545 = vunpack.c.l.b16 %v2506
    %v2546 = vunpack.c.l.b16 %v2507
    %v2547 = vunpack.c.l.b16 %v2508
    %v2548 = vunpack.c.l.b16 %v2509
    %v2549 = vunpack.c.l.b16 %v2510
    %v2550 = vunpack.c.l.b16 %v2511
    %v2551 = vunpack.c.l.b16 %v2512
    %v2552 = vunpack.c.l.b16 %v2513
    %v2553 = vunpack.c.l.b16 %v2514
    %v2554 = vunpack.c.l.b16 %v2515
    %v2555 = vunpack.c.l.b16 %v2516
    %v2556 = vunpack.c.l.b16 %v2517
    %v2557 = vunpack.c.l.b16 %v2518
    %v2558 = vunpack.c.l.b16 %v2519
    %v2559 = vunpack.c.l.b16 %v2520
    %v2560 = vunpack.c.l.b16 %v2521
    %v2561 = vpack.c.b16 %v2546, %v2545
    %v2562 = vpack.c.b16 %v2548, %v2547
    %v2563 = vpack.c.b16 %v2550, %v2549
    %v2564 = vpack.c.b16 %v2552, %v2551
    %v2565 = vpack.c.b16 %v2554, %v2553
    %v2566 = vpack.c.b16 %v2556, %v2555
    %v2567 = vpack.c.b16 %v2558, %v2557
    %v2568 = vpack.c.b16 %v2560, %v2559
    %2577 = vmatprep.subr.bf16.mxu0 0
    %2578 = vmatpush1.bf16.msra.mxu0 %v2568
    %2579 = vmatprep.subr.bf16.mxu0 0
    %2580 = vmatpush1.bf16.msra.mxu0 %v2567
    %2581 = vmatprep.subr.bf16.mxu0 0
    %2582 = vmatpush1.bf16.msra.mxu0 %v2566
    %2583 = vmatprep.subr.bf16.mxu0 0
    %2584 = vmatpush1.bf16.msra.mxu0 %v2565
    %2585 = vmatprep.subr.bf16.mxu0 0
    %2586 = vmatpush1.bf16.msra.mxu0 %v2564
    %2587 = vmatprep.subr.bf16.mxu0 0
    %2588 = vmatpush1.bf16.msra.mxu0 %v2563
    %2589 = vmatprep.subr.bf16.mxu0 0
    %2590 = vmatpush1.bf16.msra.mxu0 %v2562
    %2591 = vmatprep.subr.bf16.mxu0 0
    %2592 = vmatpush1.bf16.msra.mxu0 %v2561
    %2593 = vmatprep.subr.bf16.mxu0 0
    %2594 = vmatpush2.bf16.msra.mxu0 0
    %2595 = vmatprep.subr.bf16.mxu0 0
    %2596 = vmatpush2.bf16.msra.mxu0 0
    %2597 = vmatprep.subr.bf16.mxu0 0
    %2598 = vmatpush2.bf16.msra.mxu0 0
    %2599 = vmatprep.subr.bf16.mxu0 0
    %2600 = vmatpush2.bf16.msra.mxu0 0
    %2601 = vmatprep.subr.bf16.mxu0 0
    %2602 = vmatpush2.bf16.msra.mxu0 0
    %2603 = vmatprep.subr.bf16.mxu0 0
    %2604 = vmatpush2.bf16.msra.mxu0 0
    %2605 = vmatprep.subr.bf16.mxu0 0
    %2606 = vmatpush2.bf16.msra.mxu0 0
    %2607 = vmatprep.subr.bf16.mxu0 0
    %2608 = vmatpush2.bf16.msra.mxu0 0
    %2609 = vmatprep.mubr.bf16.mxu0 0
    %2610 = vmatmul.mubr.bf16.gmra.mxu0 %v2505
    %v2611 = vpop.f32.mrf.mxu0
    %v2612 = vadd.f32 %v2527, %v2611
    %v2613 = vpop.f32.mrf.mxu0
    %v2614 = vpop.f32.mrf.mxu0
    %v2615 = vpop.f32.mrf.mxu0
    %2616 = vdwg.mxu0
    %v2617 = vmax.f32 %v2612, 0.0
    %v2618 = vpack.c.bf16 %v2617, %v2617
    %v2619 = vld [vmem:[%s9] sm:$0xf]
    %v2620 = vld [vmem:[%s9 + $0x4] sm:$0xf]
    %v2621 = vld [vmem:[%s9 + $0x8] sm:$0xf]
    %v2622 = vld [vmem:[%s9 + $0xc] sm:$0xf]
    %v2623 = vld [vmem:[%s9 + $0x10] sm:$0xf]
    %v2624 = vld [vmem:[%s9 + $0x14] sm:$0xf]
    %v2625 = vld [vmem:[%s9 + $0x18] sm:$0xf]
    %v2626 = vld [vmem:[%s9 + $0x1c] sm:$0xf]
    %v2627 = vld [vmem:[%s9 + $0x20] sm:$0xf]
    %v2628 = vld [vmem:[%s9 + $0x24] sm:$0xf]
    %v2629 = vld [vmem:[%s9 + $0x28] sm:$0xf]
    %v2630 = vld [vmem:[%s9 + $0x2c] sm:$0xf]
    %v2631 = vld [vmem:[%s9 + $0x30] sm:$0xf]
    %v2632 = vld [vmem:[%s9 + $0x34] sm:$0xf]
    %v2633 = vld [vmem:[%s9 + $0x38] sm:$0xf]
    %v2634 = vld [vmem:[%s9 + $0x3c] sm:$0xf]
    %v2635 = vld [vmem:[#allocation11] sm:$0x1]
    %v2637 = vlaneseq
    %v2638 = vshrl.u32 %v2637, 7
    %v2639 = vsub.s32 0, %v2638
    %v2640 = vrot.slane %v2635, %v2639
    %v2658 = vunpack.c.l.b16 %v2619
    %v2659 = vunpack.c.l.b16 %v2620
    %v2660 = vunpack.c.l.b16 %v2621
    %v2661 = vunpack.c.l.b16 %v2622
    %v2662 = vunpack.c.l.b16 %v2623
    %v2663 = vunpack.c.l.b16 %v2624
    %v2664 = vunpack.c.l.b16 %v2625
    %v2665 = vunpack.c.l.b16 %v2626
    %v2666 = vunpack.c.l.b16 %v2627
    %v2667 = vunpack.c.l.b16 %v2628
    %v2668 = vunpack.c.l.b16 %v2629
    %v2669 = vunpack.c.l.b16 %v2630
    %v2670 = vunpack.c.l.b16 %v2631
    %v2671 = vunpack.c.l.b16 %v2632
    %v2672 = vunpack.c.l.b16 %v2633
    %v2673 = vunpack.c.l.b16 %v2634
    %v2674 = vpack.c.b16 %v2659, %v2658
    %v2675 = vpack.c.b16 %v2661, %v2660
    %v2676 = vpack.c.b16 %v2663, %v2662
    %v2677 = vpack.c.b16 %v2665, %v2664
    %v2678 = vpack.c.b16 %v2667, %v2666
    %v2679 = vpack.c.b16 %v2669, %v2668
    %v2680 = vpack.c.b16 %v2671, %v2670
    %v2681 = vpack.c.b16 %v2673, %v2672
    %2690 = vmatprep.subr.bf16.mxu0 0
    %2691 = vmatpush1.bf16.msra.mxu0 %v2681
    %2692 = vmatprep.subr.bf16.mxu0 0
    %2693 = vmatpush1.bf16.msra.mxu0 %v2680
    %2694 = vmatprep.subr.bf16.mxu0 0
    %2695 = vmatpush1.bf16.msra.mxu0 %v2679
    %2696 = vmatprep.subr.bf16.mxu0 0
    %2697 = vmatpush1.bf16.msra.mxu0 %v2678
    %2698 = vmatprep.subr.bf16.mxu0 0
    %2699 = vmatpush1.bf16.msra.mxu0 %v2677
    %2700 = vmatprep.subr.bf16.mxu0 0
    %2701 = vmatpush1.bf16.msra.mxu0 %v2676
    %2702 = vmatprep.subr.bf16.mxu0 0
    %2703 = vmatpush1.bf16.msra.mxu0 %v2675
    %2704 = vmatprep.subr.bf16.mxu0 0
    %2705 = vmatpush1.bf16.msra.mxu0 %v2674
    %2706 = vmatprep.subr.bf16.mxu0 0
    %2707 = vmatpush2.bf16.msra.mxu0 0
    %2708 = vmatprep.subr.bf16.mxu0 0
    %2709 = vmatpush2.bf16.msra.mxu0 0
    %2710 = vmatprep.subr.bf16.mxu0 0
    %2711 = vmatpush2.bf16.msra.mxu0 0
    %2712 = vmatprep.subr.bf16.mxu0 0
    %2713 = vmatpush2.bf16.msra.mxu0 0
    %2714 = vmatprep.subr.bf16.mxu0 0
    %2715 = vmatpush2.bf16.msra.mxu0 0
    %2716 = vmatprep.subr.bf16.mxu0 0
    %2717 = vmatpush2.bf16.msra.mxu0 0
    %2718 = vmatprep.subr.bf16.mxu0 0
    %2719 = vmatpush2.bf16.msra.mxu0 0
    %2720 = vmatprep.subr.bf16.mxu0 0
    %2721 = vmatpush2.bf16.msra.mxu0 0
    %2722 = vmatprep.mubr.bf16.mxu0 0
    %2723 = vmatmul.mubr.bf16.gmra.mxu0 %v2618
    %v2724 = vpop.f32.mrf.mxu0
    %v2725 = vadd.f32 %v2640, %v2724
    %v2726 = vpop.f32.mrf.mxu0
    %v2727 = vpop.f32.mrf.mxu0
    %v2728 = vpop.f32.mrf.mxu0
    %2729 = vdwg.mxu0
    %2730 = vst [vmem:[#allocation13] sm:$0xff] %v2725
    // Predicated region
    $region70: #{net_forward.1} parent=1 // pred_check
      _
    $region71: #{net_forward.1} parent=1 // pred_check_branch
      %2732 = sbr.rel (0) target = $region73
    $region72: #{net_forward.1} parent=1 // pred_region
      %s2734 = ssub.s32 128, 128
      %2735 = vsyncadd [#allocation4], %s2734
      %s2737 = sshll.u32 [#allocation13], 4
      %s2738 = int_to_ptr.vmem [resolvable:$true] %s2737
      %2740 = dma.vmem_to_hbm [thread:$0]  %s2738, 128, %s11, [#allocation4]
    $region73: #{net_forward.1} parent=1 // pred_fallthru
      _
    // Predicated region
    $region74: #{net_forward.1} parent=1 // pred_check
      _
    $region75: #{net_forward.1} parent=1 // pred_check_branch
      %2742 = sbr.rel (0) target = $region77
    $region76: #{net_forward.1} parent=1 // pred_region
      %2743 = dma.done [#allocation4], 128
    $region77: #{net_forward.1} parent=1 // pred_fallthru
      _
    %2744 = vsyncpa [#allocation3], 1
    %2745 = vsyncpa [#allocation6], 1
    %2746 = vsyncpa [#allocation9], 1
    %2747 = vsyncpa [#allocation12], 1
    %2748 = vsyncpa [#allocation4], 1

</llo_original>
